<compile_context>
chip_gen: v6e
topology: v6e:2x2x1
jax: 0.10.0
libtpu: 0.0.40
codegen_flags: <defaults>
</compile_context>

<pallas_src>
import jax
import jax.numpy as jnp
from jax.experimental import pallas as pl
from jax.experimental.pallas import tpu as pltpu

_BN_EPS = 1e-5


def _round_up(x, m):
    return ((x + m - 1) // m) * m


# --------------------------------------------------------------------------------------
# Stage A: 1x1 conv + folded BN + ReLU  (row-tiled matmul over flattened N*H*W)
# --------------------------------------------------------------------------------------
def _mm_bias_relu_kernel(x_ref, w_ref, b_ref, o_ref):
    acc = jnp.dot(x_ref[...], w_ref[...], preferred_element_type=jnp.float32)
    acc = jnp.maximum(acc + b_ref[...], 0.0)
    o_ref[...] = acc.astype(o_ref.dtype)


def _pick_block_rows(m, target=1024):
    """Big row tiles (amortize ~0.35us/step), but aim for >= 4 grid steps when possible so
    v7x's two TensorCores each get >= 2 pipelined steps."""
    if m >= 4 * target:
        return target
    if m >= 32:
        return min(_round_up(pl.cdiv(m, 4), 8), m)
    return m


def _pointwise_bn_relu(x_nhwc, w_io, bias):
    """1x1 conv (+folded BN bias)(+ReLU); bf16 operands, bf16 output (inter-stage)."""
    n, h, w, cin = x_nhwc.shape
    cout = w_io.shape[1]
    m = n * h * w
    x2 = x_nhwc.reshape(m, cin)
    br = _pick_block_rows(m)

    out = pl.pallas_call(
        _mm_bias_relu_kernel,
        out_shape=jax.ShapeDtypeStruct((m, cout), jnp.bfloat16),
        grid_spec=pltpu.PrefetchScalarGridSpec(
            num_scalar_prefetch=0,
            grid=(pl.cdiv(m, br),),
            in_specs=[
                pl.BlockSpec((br, cin), lambda i: (i, 0)),
                pl.BlockSpec((cin, cout), lambda i: (0, 0)),   # resident weights
                pl.BlockSpec((1, cout), lambda i: (0, 0)),     # resident bias
            ],
            out_specs=pl.BlockSpec((br, cout), lambda i: (i, 0)),
        ),
        compiler_params=pltpu.CompilerParams(dimension_semantics=("parallel",)),
    )(x2, w_io, bias)
    return out.reshape(n, h, w, cout)


# --------------------------------------------------------------------------------------
# Stage B: 3x3 conv (pad=1) + folded BN + ReLU + fused final 1x1 conv
# --------------------------------------------------------------------------------------
def _conv3x3_w3_kernel(xm_ref, xt_ref, xb_ref, w2_ref, b2_ref, w3_ref, o_ref, xpad_ref):
    """Per (batch, row-tile) step.

    xm_ref : (1, th, W, Cmid) bf16   rows of this spatial tile
    xt_ref : (1, 1,  W, Cmid) bf16   row above the tile (zeroed at the top image edge)
    xb_ref : (1, 1,  W, Cmid) bf16   row below the tile (zeroed at the bottom image edge)
    w2_ref : (3, 3, Cmid, Cmid) bf16 3x3 weights (HWIO) with BN scale folded in
    b2_ref : (1, Cmid) f32           folded BN bias
    w3_ref : (Cmid, Ctgt) bf16       final 1x1 conv weights
    o_ref  : (1, th, W, Ctgt)
    xpad_ref: VMEM (th+2, W+2, Cmid) f32 scratch (zero-padded tile with halo)
    """
    t = pl.program_id(1)
    nt = pl.num_programs(1)
    _, th, w, cmid = xm_ref.shape
    ctgt = o_ref.shape[-1]

    # ---- assemble the zero-padded tile in VMEM (in-kernel halo, no HBM jnp.pad) ------
    xpad_ref[...] = jnp.zeros(xpad_ref.shape, xpad_ref.dtype)
    xpad_ref[1:th + 1, 1:w + 1, :] = xm_ref[0].astype(xpad_ref.dtype)
    top = xt_ref[0].astype(xpad_ref.dtype)
    bot = xb_ref[0].astype(xpad_ref.dtype)
    xpad_ref[0:1, 1:w + 1, :] = jnp.where(t > 0, top, jnp.zeros_like(top))
    xpad_ref[th + 1:th + 2, 1:w + 1, :] = jnp.where(t < nt - 1, bot, jnp.zeros_like(bot))

    # ---- 9 statically-unrolled MXU taps ----------------------------------------------
    acc = jnp.zeros((th * w, cmid), jnp.float32)
    for dw in range(3):
        # one width-shifted load per dw (hoisted out of the dh loop); row slices of the
        # flattened tile below are sublane-aligned when W % 8 == 0
        xs = xpad_ref[:, dw:dw + w, :].astype(jnp.bfloat16).reshape((th + 2) * w, cmid)
        for dh in range(3):
            acc += jnp.dot(xs[dh * w:(dh + th) * w, :], w2_ref[dh, dw],
                           preferred_element_type=jnp.float32)

    # ---- folded BN bias + ReLU (f32), then the fused final 1x1 conv ------------------
    y = jnp.maximum(acc + b2_ref[...], 0.0)
    out = jnp.dot(y.astype(w3_ref.dtype), w3_ref[...], preferred_element_type=jnp.float32)
    o_ref[...] = out.reshape(1, th, w, ctgt).astype(o_ref.dtype)


def _pick_rows_3x3(h, w, cmid, max_acc_bytes=1 << 20):
    """Largest divisor of h whose f32 tap accumulator (th*W*Cmid*4B) stays small, keeping
    accumulator + halo scratch + double-buffered blocks far below v7x's 64 MiB VMEM and
    giving multiple pipelined grid steps per image at real sizes."""
    for th in range(h, 0, -1):
        if h % th == 0 and th * w * cmid * 4 <= max_acc_bytes:
            return th
    return 1


def _conv3x3_bn_relu_proj(y1, w2_hwio, b2, w3, out_dtype):
    n, h, w, cmid = y1.shape
    ctgt = w3.shape[1]
    th = _pick_rows_3x3(h, w, cmid)
    nt = h // th

    main_spec = pl.BlockSpec((1, th, w, cmid), lambda b, t: (b, t, 0, 0))
    # 1-row halo operands: same array, clamped row index.  The clamped row is only ever
    # read (never used) at the image border -- the kernel zeroes it there.
    top_spec = pl.BlockSpec(
        (1, 1, w, cmid), lambda b, t: (b, jnp.maximum(t * th - 1, 0), 0, 0))
    bot_spec = pl.BlockSpec(
        (1, 1, w, cmid), lambda b, t: (b, jnp.minimum((t + 1) * th, h - 1), 0, 0))

    return pl.pallas_call(
        _conv3x3_w3_kernel,
        out_shape=jax.ShapeDtypeStruct((n, h, w, ctgt), out_dtype),
        grid_spec=pltpu.PrefetchScalarGridSpec(
            num_scalar_prefetch=0,
            grid=(n, nt),
            in_specs=[
                main_spec, top_spec, bot_spec,
                pl.BlockSpec((3, 3, cmid, cmid), lambda b, t: (0, 0, 0, 0)),  # resident
                pl.BlockSpec((1, cmid), lambda b, t: (0, 0)),                 # resident
                pl.BlockSpec((cmid, ctgt), lambda b, t: (0, 0)),              # resident
            ],
            out_specs=pl.BlockSpec((1, th, w, ctgt), lambda b, t: (b, t, 0, 0)),
            scratch_shapes=[pltpu.VMEM((th + 2, w + 2, cmid), jnp.float32)],
        ),
        compiler_params=pltpu.CompilerParams(
            dimension_semantics=("parallel", "parallel")),
    )(y1, y1, y1, w2_hwio, b2, w3)


# --------------------------------------------------------------------------------------
# Forward wrapper (BN folding + layout)
# --------------------------------------------------------------------------------------
def _bn_scale_bias(gamma, beta, mean, var):
    s = gamma / jnp.sqrt(var + _BN_EPS)
    return s, beta - mean * s


def proj_forward(x_nchw, params):
    """Pallas forward of Proj: conv1x1 -> BN -> ReLU -> conv3x3 -> BN -> ReLU -> conv1x1."""
    # ---- fold inference-mode BN into conv weights / per-channel biases; bf16 operands ----
    s1, b1 = _bn_scale_bias(*params["bn1"])
    w1 = (params["w1"][:, :, 0, 0].T * s1[None, :]).astype(jnp.bfloat16)        # (Cin, Cmid)
    b1 = b1.astype(jnp.float32).reshape(1, -1)

    s2, b2 = _bn_scale_bias(*params["bn2"])
    w2 = (jnp.transpose(params["w2"], (2, 3, 1, 0))
          * s2[None, None, None, :]).astype(jnp.bfloat16)                        # (3,3,Cmid,Cmid)
    b2 = b2.astype(jnp.float32).reshape(1, -1)

    w3 = params["w3"][:, :, 0, 0].T.astype(jnp.bfloat16)                         # (Cmid, Ctgt)

    # NCHW -> NHWC (channels on the 128-lane axis), bf16 activations for the MXU.
    y = jnp.transpose(x_nchw.astype(jnp.bfloat16), (0, 2, 3, 1))
    y = _pointwise_bn_relu(y, w1, b1)                              # 1x1 + BN + ReLU
    y = _conv3x3_bn_relu_proj(y, w2, b2, w3, out_dtype=x_nchw.dtype)  # 3x3+BN+ReLU+1x1 fused
    return jnp.transpose(y, (0, 3, 1, 2))                          # back to NCHW


# --------------------------------------------------------------------------------------
# Pure-JAX reference (mirrors the PyTorch forward, BN in inference mode)
# --------------------------------------------------------------------------------------
def _reference(x_nchw, params):
    prec = jax.lax.Precision.HIGHEST

    def conv(x, w, pad):
        return jax.lax.conv_general_dilated(
            x, w, window_strides=(1, 1), padding=pad,
            dimension_numbers=("NCHW", "OIHW", "NCHW"), precision=prec)

    def bn_relu(x, bn):
        gamma, beta, mean, var = bn
        s = gamma / jnp.sqrt(var + _BN_EPS)
        sh = beta - mean * s
        return jnp.maximum(x * s[None, :, None, None] + sh[None, :, None, None], 0.0)

    y = conv(x_nchw, params["w1"], [(0, 0), (0, 0)])
    y = bn_relu(y, params["bn1"])
    y = conv(y, params["w2"], [(1, 1), (1, 1)])
    y = bn_relu(y, params["bn2"])
    y = conv(y, params["w3"], [(0, 0), (0, 0)])
    return y


if __name__ == "__main__":
    key = jax.random.PRNGKey(0)
    ks = jax.random.split(key, 12)

    # Small shapes consistent with Proj (defaults 1024 -> 256 -> 128; scaled down for the test)
    batch, h, w = 2, 8, 8
    c_in, c_tgt = 32, 8
    c_mid = 2 * c_tgt

    x = jax.random.normal(ks[0], (batch, c_in, h, w), jnp.float32)

    params = {
        # PyTorch conv weight layout: (Cout, Cin, kh, kw), bias-free
        "w1": jax.random.normal(ks[1], (c_mid, c_in, 1, 1), jnp.float32) / jnp.sqrt(c_in),
        "w2": jax.random.normal(ks[2], (c_mid, c_mid, 3, 3), jnp.float32) / jnp.sqrt(9.0 * c_mid),
        "w3": jax.random.normal(ks[3], (c_tgt, c_mid, 1, 1), jnp.float32) / jnp.sqrt(c_mid),
        # BatchNorm2d params: (gamma, beta, running_mean, running_var)
        "bn1": (jax.random.uniform(ks[4], (c_mid,), jnp.float32, 0.5, 1.5),
                0.1 * jax.random.normal(ks[5], (c_mid,), jnp.float32),
                0.1 * jax.random.normal(ks[6], (c_mid,), jnp.float32),
                jax.random.uniform(ks[7], (c_mid,), jnp.float32, 0.5, 1.5)),
        "bn2": (jax.random.uniform(ks[8], (c_mid,), jnp.float32, 0.5, 1.5),
                0.1 * jax.random.normal(ks[9], (c_mid,), jnp.float32),
                0.1 * jax.random.normal(ks[10], (c_mid,), jnp.float32),
                jax.random.uniform(ks[11], (c_mid,), jnp.float32, 0.5, 1.5)),
    }

    out = jax.jit(proj_forward)(x, params)
    out = jax.block_until_ready(out)

    ref = _reference(x, params)
    assert out.shape == ref.shape == (batch, c_tgt, h, w)
    assert out.dtype == ref.dtype
    # bf16 MXU operands + bf16 inter-stage activation vs f32 HIGHEST reference
    assert jnp.allclose(out, ref, atol=5e-2, rtol=5e-2), "mismatch vs reference"

    print("KERNEL_OK")
</pallas_src>

<mosaic_0001>
module attributes {stable_mosaic.version = 11 : i64} {
  func.func @_conv3x3_w3_kernel(%arg0: i32, %arg1: i32, %arg2: memref<1x8x8x16xbf16, #tpu.memory_space<vmem>>, %arg3: memref<1x1x8x16xbf16, #tpu.memory_space<vmem>>, %arg4: memref<1x1x8x16xbf16, #tpu.memory_space<vmem>>, %arg5: memref<3x3x16x16xbf16, #tpu.memory_space<vmem>>, %arg6: memref<1x16xf32, #tpu.memory_space<vmem>>, %arg7: memref<16x8xbf16, #tpu.memory_space<vmem>>, %arg8: memref<1x8x8x8xf32, #tpu.memory_space<vmem>>, %arg9: memref<10x10x16xf32, #tpu.memory_space<vmem>>) attributes {dimension_semantics = [#tpu.dimension_semantics<parallel>, #tpu.dimension_semantics<parallel>], iteration_bounds = array<i64: 2, 1>, scalar_prefetch = 0 : i64, scratch_operands = 1 : i64, tpu.core_type = #tpu.core_type<tc>, window_params = [{transform_indices = @transform_0, window_bounds = array<i64: 1, 8, 8, 16>}, {transform_indices = @transform_1, window_bounds = array<i64: 1, 1, 8, 16>}, {transform_indices = @transform_2, window_bounds = array<i64: 1, 1, 8, 16>}, {pipeline_mode = #tpu.pipeline_mode<synchronous>, transform_indices = @transform_3, window_bounds = array<i64: 3, 3, 16, 16>}, {pipeline_mode = #tpu.pipeline_mode<synchronous>, transform_indices = @transform_4, window_bounds = array<i64: 1, 16>}, {pipeline_mode = #tpu.pipeline_mode<synchronous>, transform_indices = @transform_5, window_bounds = array<i64: 16, 8>}, {transform_indices = @transform_6, window_bounds = array<i64: 1, 8, 8, 8>}]} {
    %cst = arith.constant 0.000000e+00 : f32
    %0 = vector.broadcast %cst : f32 to vector<10x10x16xf32>
    %c0 = arith.constant 0 : index
    %c0_0 = arith.constant 0 : index
    %c0_1 = arith.constant 0 : index
    %1 = vector.load %arg9[%c0, %c0_0, %c0_1] : memref<10x10x16xf32, #tpu.memory_space<vmem>>, vector<10x10x16xf32>
    tpu.vector_store %arg9[%c0, %c0_0, %c0_1], %0 {strides = array<i32>} : memref<10x10x16xf32, #tpu.memory_space<vmem>>, vector<10x10x16xf32>,
    %c0_2 = arith.constant 0 : index
    %c0_3 = arith.constant 0 : index
    %c0_4 = arith.constant 0 : index
    %c0_5 = arith.constant 0 : index
    %2 = vector.load %arg2[%c0_2, %c0_3, %c0_4, %c0_5] : memref<1x8x8x16xbf16, #tpu.memory_space<vmem>>, vector<1x8x8x16xbf16>
    %3 = vector.shape_cast %2 : vector<1x8x8x16xbf16> to vector<8x8x16xbf16>
    %4 = arith.extf %3 : vector<8x8x16xbf16> to vector<8x8x16xf32>
    %c1 = arith.constant 1 : index
    %c1_6 = arith.constant 1 : index
    %c0_7 = arith.constant 0 : index
    %5 = vector.load %arg9[%c1, %c1_6, %c0_7] : memref<10x10x16xf32, #tpu.memory_space<vmem>>, vector<8x8x16xf32>
    tpu.vector_store %arg9[%c1, %c1_6, %c0_7], %4 {strides = array<i32>} : memref<10x10x16xf32, #tpu.memory_space<vmem>>, vector<8x8x16xf32>,
    %c0_8 = arith.constant 0 : index
    %c0_9 = arith.constant 0 : index
    %c0_10 = arith.constant 0 : index
    %c0_11 = arith.constant 0 : index
    %6 = vector.load %arg3[%c0_8, %c0_9, %c0_10, %c0_11] : memref<1x1x8x16xbf16, #tpu.memory_space<vmem>>, vector<1x1x8x16xbf16>
    %7 = vector.shape_cast %6 : vector<1x1x8x16xbf16> to vector<1x8x16xbf16>
    %8 = arith.extf %7 : vector<1x8x16xbf16> to vector<1x8x16xf32>
    %c0_12 = arith.constant 0 : index
    %c0_13 = arith.constant 0 : index
    %c0_14 = arith.constant 0 : index
    %c0_15 = arith.constant 0 : index
    %9 = vector.load %arg4[%c0_12, %c0_13, %c0_14, %c0_15] : memref<1x1x8x16xbf16, #tpu.memory_space<vmem>>, vector<1x1x8x16xbf16>
    %10 = vector.shape_cast %9 : vector<1x1x8x16xbf16> to vector<1x8x16xbf16>
    %11 = arith.extf %10 : vector<1x8x16xbf16> to vector<1x8x16xf32>
    %c0_i32 = arith.constant 0 : i32
    %12 = arith.cmpi sgt, %arg1, %c0_i32 : i32
    %cst_16 = arith.constant 0.000000e+00 : f32
    %13 = vector.broadcast %cst_16 : f32 to vector<1x8x16xf32>
    %14 = arith.select %12, %8, %13 : vector<1x8x16xf32>
    %c0_17 = arith.constant 0 : index
    %c1_18 = arith.constant 1 : index
    %c0_19 = arith.constant 0 : index
    %15 = vector.load %arg9[%c0_17, %c1_18, %c0_19] : memref<10x10x16xf32, #tpu.memory_space<vmem>>, vector<1x8x16xf32>
    tpu.vector_store %arg9[%c0_17, %c1_18, %c0_19], %14 {strides = array<i32>} : memref<10x10x16xf32, #tpu.memory_space<vmem>>, vector<1x8x16xf32>,
    %c0_i32_20 = arith.constant 0 : i32
    %16 = arith.cmpi slt, %arg1, %c0_i32_20 : i32
    %cst_21 = arith.constant 0.000000e+00 : f32
    %17 = vector.broadcast %cst_21 : f32 to vector<1x8x16xf32>
    %18 = arith.select %16, %11, %17 : vector<1x8x16xf32>
    %c9 = arith.constant 9 : index
    %c1_22 = arith.constant 1 : index
    %c0_23 = arith.constant 0 : index
    %19 = vector.load %arg9[%c9, %c1_22, %c0_23] : memref<10x10x16xf32, #tpu.memory_space<vmem>>, vector<1x8x16xf32>
    tpu.vector_store %arg9[%c9, %c1_22, %c0_23], %18 {strides = array<i32>} : memref<10x10x16xf32, #tpu.memory_space<vmem>>, vector<1x8x16xf32>,
    %cst_24 = arith.constant 0.000000e+00 : f32
    %20 = vector.broadcast %cst_24 : f32 to vector<64x16xf32>
    %c0_25 = arith.constant 0 : index
    %c0_26 = arith.constant 0 : index
    %c0_27 = arith.constant 0 : index
    %21 = vector.load %arg9[%c0_25, %c0_26, %c0_27] : memref<10x10x16xf32, #tpu.memory_space<vmem>>, vector<10x8x16xf32>
    %22 = arith.truncf %21 : vector<10x8x16xf32> to vector<10x8x16xbf16>
    %23 = vector.shape_cast %22 : vector<10x8x16xbf16> to vector<80x16xbf16>
    %24 = vector.extract_strided_slice %23 {offsets = [0, 0], sizes = [64, 16], strides = [1, 1]} : vector<80x16xbf16> to vector<64x16xbf16>
    %c0_28 = arith.constant 0 : index
    %c0_29 = arith.constant 0 : index
    %c0_30 = arith.constant 0 : index
    %c0_31 = arith.constant 0 : index
    %25 = vector.load %arg5[%c0_28, %c0_29, %c0_30, %c0_31] : memref<3x3x16x16xbf16, #tpu.memory_space<vmem>>, vector<1x1x16x16xbf16>
    %26 = vector.shape_cast %25 : vector<1x1x16x16xbf16> to vector<16x16xbf16>
    %cst_32 = arith.constant dense<0.000000e+00> : vector<64x16xf32>
    %27 = tpu.matmul %24, %26, %cst_32 {dimension_numbers = #tpu.dot_dimension_numbers<[1], [0], [0], [1], [0, 0, 1, 1], [], []>} : vector<64x16xbf16>, vector<16x16xbf16>, vector<64x16xf32> -> vector<64x16xf32>
    %28 = arith.addf %20, %27 : vector<64x16xf32>
    %29 = vector.extract_strided_slice %23 {offsets = [8, 0], sizes = [64, 16], strides = [1, 1]} : vector<80x16xbf16> to vector<64x16xbf16>
    %c1_33 = arith.constant 1 : index
    %c0_34 = arith.constant 0 : index
    %c0_35 = arith.constant 0 : index
    %c0_36 = arith.constant 0 : index
    %30 = vector.load %arg5[%c1_33, %c0_34, %c0_35, %c0_36] : memref<3x3x16x16xbf16, #tpu.memory_space<vmem>>, vector<1x1x16x16xbf16>
    %31 = vector.shape_cast %30 : vector<1x1x16x16xbf16> to vector<16x16xbf16>
    %cst_37 = arith.constant dense<0.000000e+00> : vector<64x16xf32>
    %32 = tpu.matmul %29, %31, %cst_37 {dimension_numbers = #tpu.dot_dimension_numbers<[1], [0], [0], [1], [0, 0, 1, 1], [], []>} : vector<64x16xbf16>, vector<16x16xbf16>, vector<64x16xf32> -> vector<64x16xf32>
    %33 = arith.addf %28, %32 : vector<64x16xf32>
    %34 = vector.extract_strided_slice %23 {offsets = [16, 0], sizes = [64, 16], strides = [1, 1]} : vector<80x16xbf16> to vector<64x16xbf16>
    %c2 = arith.constant 2 : index
    %c0_38 = arith.constant 0 : index
    %c0_39 = arith.constant 0 : index
    %c0_40 = arith.constant 0 : index
    %35 = vector.load %arg5[%c2, %c0_38, %c0_39, %c0_40] : memref<3x3x16x16xbf16, #tpu.memory_space<vmem>>, vector<1x1x16x16xbf16>
    %36 = vector.shape_cast %35 : vector<1x1x16x16xbf16> to vector<16x16xbf16>
    %cst_41 = arith.constant dense<0.000000e+00> : vector<64x16xf32>
    %37 = tpu.matmul %34, %36, %cst_41 {dimension_numbers = #tpu.dot_dimension_numbers<[1], [0], [0], [1], [0, 0, 1, 1], [], []>} : vector<64x16xbf16>, vector<16x16xbf16>, vector<64x16xf32> -> vector<64x16xf32>
    %38 = arith.addf %33, %37 : vector<64x16xf32>
    %c0_42 = arith.constant 0 : index
    %c1_43 = arith.constant 1 : index
    %c0_44 = arith.constant 0 : index
    %39 = vector.load %arg9[%c0_42, %c1_43, %c0_44] : memref<10x10x16xf32, #tpu.memory_space<vmem>>, vector<10x8x16xf32>
    %40 = arith.truncf %39 : vector<10x8x16xf32> to vector<10x8x16xbf16>
    %41 = vector.shape_cast %40 : vector<10x8x16xbf16> to vector<80x16xbf16>
    %42 = vector.extract_strided_slice %41 {offsets = [0, 0], sizes = [64, 16], strides = [1, 1]} : vector<80x16xbf16> to vector<64x16xbf16>
    %c0_45 = arith.constant 0 : index
    %c1_46 = arith.constant 1 : index
    %c0_47 = arith.constant 0 : index
    %c0_48 = arith.constant 0 : index
    %43 = vector.load %arg5[%c0_45, %c1_46, %c0_47, %c0_48] : memref<3x3x16x16xbf16, #tpu.memory_space<vmem>>, vector<1x1x16x16xbf16>
    %44 = vector.shape_cast %43 : vector<1x1x16x16xbf16> to vector<16x16xbf16>
    %cst_49 = arith.constant dense<0.000000e+00> : vector<64x16xf32>
    %45 = tpu.matmul %42, %44, %cst_49 {dimension_numbers = #tpu.dot_dimension_numbers<[1], [0], [0], [1], [0, 0, 1, 1], [], []>} : vector<64x16xbf16>, vector<16x16xbf16>, vector<64x16xf32> -> vector<64x16xf32>
    %46 = arith.addf %38, %45 : vector<64x16xf32>
    %47 = vector.extract_strided_slice %41 {offsets = [8, 0], sizes = [64, 16], strides = [1, 1]} : vector<80x16xbf16> to vector<64x16xbf16>
    %c1_50 = arith.constant 1 : index
    %c1_51 = arith.constant 1 : index
    %c0_52 = arith.constant 0 : index
    %c0_53 = arith.constant 0 : index
    %48 = vector.load %arg5[%c1_50, %c1_51, %c0_52, %c0_53] : memref<3x3x16x16xbf16, #tpu.memory_space<vmem>>, vector<1x1x16x16xbf16>
    %49 = vector.shape_cast %48 : vector<1x1x16x16xbf16> to vector<16x16xbf16>
    %cst_54 = arith.constant dense<0.000000e+00> : vector<64x16xf32>
    %50 = tpu.matmul %47, %49, %cst_54 {dimension_numbers = #tpu.dot_dimension_numbers<[1], [0], [0], [1], [0, 0, 1, 1], [], []>} : vector<64x16xbf16>, vector<16x16xbf16>, vector<64x16xf32> -> vector<64x16xf32>
    %51 = arith.addf %46, %50 : vector<64x16xf32>
    %52 = vector.extract_strided_slice %41 {offsets = [16, 0], sizes = [64, 16], strides = [1, 1]} : vector<80x16xbf16> to vector<64x16xbf16>
    %c2_55 = arith.constant 2 : index
    %c1_56 = arith.constant 1 : index
    %c0_57 = arith.constant 0 : index
    %c0_58 = arith.constant 0 : index
    %53 = vector.load %arg5[%c2_55, %c1_56, %c0_57, %c0_58] : memref<3x3x16x16xbf16, #tpu.memory_space<vmem>>, vector<1x1x16x16xbf16>
    %54 = vector.shape_cast %53 : vector<1x1x16x16xbf16> to vector<16x16xbf16>
    %cst_59 = arith.constant dense<0.000000e+00> : vector<64x16xf32>
    %55 = tpu.matmul %52, %54, %cst_59 {dimension_numbers = #tpu.dot_dimension_numbers<[1], [0], [0], [1], [0, 0, 1, 1], [], []>} : vector<64x16xbf16>, vector<16x16xbf16>, vector<64x16xf32> -> vector<64x16xf32>
    %56 = arith.addf %51, %55 : vector<64x16xf32>
    %c0_60 = arith.constant 0 : index
    %c2_61 = arith.constant 2 : index
    %c0_62 = arith.constant 0 : index
    %57 = vector.load %arg9[%c0_60, %c2_61, %c0_62] : memref<10x10x16xf32, #tpu.memory_space<vmem>>, vector<10x8x16xf32>
    %58 = arith.truncf %57 : vector<10x8x16xf32> to vector<10x8x16xbf16>
    %59 = vector.shape_cast %58 : vector<10x8x16xbf16> to vector<80x16xbf16>
    %60 = vector.extract_strided_slice %59 {offsets = [0, 0], sizes = [64, 16], strides = [1, 1]} : vector<80x16xbf16> to vector<64x16xbf16>
    %c0_63 = arith.constant 0 : index
    %c2_64 = arith.constant 2 : index
    %c0_65 = arith.constant 0 : index
    %c0_66 = arith.constant 0 : index
    %61 = vector.load %arg5[%c0_63, %c2_64, %c0_65, %c0_66] : memref<3x3x16x16xbf16, #tpu.memory_space<vmem>>, vector<1x1x16x16xbf16>
    %62 = vector.shape_cast %61 : vector<1x1x16x16xbf16> to vector<16x16xbf16>
    %cst_67 = arith.constant dense<0.000000e+00> : vector<64x16xf32>
    %63 = tpu.matmul %60, %62, %cst_67 {dimension_numbers = #tpu.dot_dimension_numbers<[1], [0], [0], [1], [0, 0, 1, 1], [], []>} : vector<64x16xbf16>, vector<16x16xbf16>, vector<64x16xf32> -> vector<64x16xf32>
    %64 = arith.addf %56, %63 : vector<64x16xf32>
    %65 = vector.extract_strided_slice %59 {offsets = [8, 0], sizes = [64, 16], strides = [1, 1]} : vector<80x16xbf16> to vector<64x16xbf16>
    %c1_68 = arith.constant 1 : index
    %c2_69 = arith.constant 2 : index
    %c0_70 = arith.constant 0 : index
    %c0_71 = arith.constant 0 : index
    %66 = vector.load %arg5[%c1_68, %c2_69, %c0_70, %c0_71] : memref<3x3x16x16xbf16, #tpu.memory_space<vmem>>, vector<1x1x16x16xbf16>
    %67 = vector.shape_cast %66 : vector<1x1x16x16xbf16> to vector<16x16xbf16>
    %cst_72 = arith.constant dense<0.000000e+00> : vector<64x16xf32>
    %68 = tpu.matmul %65, %67, %cst_72 {dimension_numbers = #tpu.dot_dimension_numbers<[1], [0], [0], [1], [0, 0, 1, 1], [], []>} : vector<64x16xbf16>, vector<16x16xbf16>, vector<64x16xf32> -> vector<64x16xf32>
    %69 = arith.addf %64, %68 : vector<64x16xf32>
    %70 = vector.extract_strided_slice %59 {offsets = [16, 0], sizes = [64, 16], strides = [1, 1]} : vector<80x16xbf16> to vector<64x16xbf16>
    %c2_73 = arith.constant 2 : index
    %c2_74 = arith.constant 2 : index
    %c0_75 = arith.constant 0 : index
    %c0_76 = arith.constant 0 : index
    %71 = vector.load %arg5[%c2_73, %c2_74, %c0_75, %c0_76] : memref<3x3x16x16xbf16, #tpu.memory_space<vmem>>, vector<1x1x16x16xbf16>
    %72 = vector.shape_cast %71 : vector<1x1x16x16xbf16> to vector<16x16xbf16>
    %cst_77 = arith.constant dense<0.000000e+00> : vector<64x16xf32>
    %73 = tpu.matmul %70, %72, %cst_77 {dimension_numbers = #tpu.dot_dimension_numbers<[1], [0], [0], [1], [0, 0, 1, 1], [], []>} : vector<64x16xbf16>, vector<16x16xbf16>, vector<64x16xf32> -> vector<64x16xf32>
    %74 = arith.addf %69, %73 : vector<64x16xf32>
    %c0_78 = arith.constant 0 : index
    %c0_79 = arith.constant 0 : index
    %75 = vector.load %arg6[%c0_78, %c0_79] : memref<1x16xf32, #tpu.memory_space<vmem>>, vector<1x16xf32>
    %76 = vector.broadcast %75 : vector<1x16xf32> to vector<64x16xf32>
    %77 = arith.addf %74, %76 : vector<64x16xf32>
    %cst_80 = arith.constant 0.000000e+00 : f32
    %78 = vector.broadcast %cst_80 : f32 to vector<64x16xf32>
    %79 = arith.maximumf %77, %78 : vector<64x16xf32>
    %80 = arith.truncf %79 : vector<64x16xf32> to vector<64x16xbf16>
    %c0_81 = arith.constant 0 : index
    %c0_82 = arith.constant 0 : index
    %81 = vector.load %arg7[%c0_81, %c0_82] : memref<16x8xbf16, #tpu.memory_space<vmem>>, vector<16x8xbf16>
    %cst_83 = arith.constant dense<0.000000e+00> : vector<64x8xf32>
    %82 = tpu.matmul %80, %81, %cst_83 {dimension_numbers = #tpu.dot_dimension_numbers<[1], [0], [0], [1], [0, 0, 1, 1], [], []>} : vector<64x16xbf16>, vector<16x8xbf16>, vector<64x8xf32> -> vector<64x8xf32>
    %83 = vector.shape_cast %82 : vector<64x8xf32> to vector<1x8x8x8xf32>
    %c0_84 = arith.constant 0 : index
    %c0_85 = arith.constant 0 : index
    %c0_86 = arith.constant 0 : index
    %c0_87 = arith.constant 0 : index
    %84 = vector.load %arg8[%c0_84, %c0_85, %c0_86, %c0_87] : memref<1x8x8x8xf32, #tpu.memory_space<vmem>>, vector<1x8x8x8xf32>
    tpu.vector_store %arg8[%c0_84, %c0_85, %c0_86, %c0_87], %83 {strides = array<i32>} : memref<1x8x8x8xf32, #tpu.memory_space<vmem>>, vector<1x8x8x8xf32>,
    return
  }
  func.func @transform_0(%arg0: i32, %arg1: i32) -> (i32, i32, i32, i32) {
    %c0_i32 = arith.constant 0 : i32
    %c0_i32_0 = arith.constant 0 : i32
    %c0_i32_1 = arith.constant 0 : i32
    return %arg0, %arg1, %c0_i32, %c0_i32_0 : i32, i32, i32, i32
  }
  func.func @transform_1(%arg0: i32, %arg1: i32) -> (i32, i32, i32, i32) {
    %c8_i32 = arith.constant 8 : i32
    %0 = arith.muli %arg1, %c8_i32 : i32
    %c1_i32 = arith.constant 1 : i32
    %1 = arith.subi %0, %c1_i32 : i32
    %c0_i32 = arith.constant 0 : i32
    %2 = arith.maxsi %1, %c0_i32 : i32
    %c0_i32_0 = arith.constant 0 : i32
    %c0_i32_1 = arith.constant 0 : i32
    %c0_i32_2 = arith.constant 0 : i32
    return %arg0, %2, %c0_i32_0, %c0_i32_1 : i32, i32, i32, i32
  }
  func.func @transform_2(%arg0: i32, %arg1: i32) -> (i32, i32, i32, i32) {
    %c1_i32 = arith.constant 1 : i32
    %0 = arith.addi %arg1, %c1_i32 : i32
    %c8_i32 = arith.constant 8 : i32
    %1 = arith.muli %0, %c8_i32 : i32
    %c7_i32 = arith.constant 7 : i32
    %2 = arith.minsi %1, %c7_i32 : i32
    %c0_i32 = arith.constant 0 : i32
    %c0_i32_0 = arith.constant 0 : i32
    %c0_i32_1 = arith.constant 0 : i32
    return %arg0, %2, %c0_i32, %c0_i32_0 : i32, i32, i32, i32
  }
  func.func @transform_3(%arg0: i32, %arg1: i32) -> (i32, i32, i32, i32) {
    %c0_i32 = arith.constant 0 : i32
    %c0_i32_0 = arith.constant 0 : i32
    %c0_i32_1 = arith.constant 0 : i32
    %c0_i32_2 = arith.constant 0 : i32
    %c0_i32_3 = arith.constant 0 : i32
    return %c0_i32, %c0_i32_0, %c0_i32_1, %c0_i32_2 : i32, i32, i32, i32
  }
  func.func @transform_4(%arg0: i32, %arg1: i32) -> (i32, i32) {
    %c0_i32 = arith.constant 0 : i32
    %c0_i32_0 = arith.constant 0 : i32
    %c0_i32_1 = arith.constant 0 : i32
    return %c0_i32, %c0_i32_0 : i32, i32
  }
  func.func @transform_5(%arg0: i32, %arg1: i32) -> (i32, i32) {
    %c0_i32 = arith.constant 0 : i32
    %c0_i32_0 = arith.constant 0 : i32
    %c0_i32_1 = arith.constant 0 : i32
    return %c0_i32, %c0_i32_0 : i32, i32
  }
  func.func @transform_6(%arg0: i32, %arg1: i32) -> (i32, i32, i32, i32) {
    %c0_i32 = arith.constant 0 : i32
    %c0_i32_0 = arith.constant 0 : i32
    %c0_i32_1 = arith.constant 0 : i32
    return %arg0, %arg1, %c0_i32, %c0_i32_0 : i32, i32, i32, i32
  }
}

module attributes {stable_mosaic.version = 11 : i64} {
  func.func @_mm_bias_relu_kernel(%arg0: i32, %arg1: memref<32x32xbf16, #tpu.memory_space<vmem>>, %arg2: memref<32x16xbf16, #tpu.memory_space<vmem>>, %arg3: memref<1x16xf32, #tpu.memory_space<vmem>>, %arg4: memref<32x16xbf16, #tpu.memory_space<vmem>>) attributes {dimension_semantics = [#tpu.dimension_semantics<parallel>], iteration_bounds = array<i64: 4>, scalar_prefetch = 0 : i64, scratch_operands = 0 : i64, tpu.core_type = #tpu.core_type<tc>, window_params = [{transform_indices = @transform_0, window_bounds = array<i64: 32, 32>}, {pipeline_mode = #tpu.pipeline_mode<synchronous>, transform_indices = @transform_1, window_bounds = array<i64: 32, 16>}, {pipeline_mode = #tpu.pipeline_mode<synchronous>, transform_indices = @transform_2, window_bounds = array<i64: 1, 16>}, {transform_indices = @transform_3, window_bounds = array<i64: 32, 16>}]} {
    %c0 = arith.constant 0 : index
    %c0_0 = arith.constant 0 : index
    %0 = vector.load %arg1[%c0, %c0_0] : memref<32x32xbf16, #tpu.memory_space<vmem>>, vector<32x32xbf16>
    %c0_1 = arith.constant 0 : index
    %c0_2 = arith.constant 0 : index
    %1 = vector.load %arg2[%c0_1, %c0_2] : memref<32x16xbf16, #tpu.memory_space<vmem>>, vector<32x16xbf16>
    %cst = arith.constant dense<0.000000e+00> : vector<32x16xf32>
    %2 = tpu.matmul %0, %1, %cst {dimension_numbers = #tpu.dot_dimension_numbers<[1], [0], [0], [1], [0, 0, 1, 1], [], []>} : vector<32x32xbf16>, vector<32x16xbf16>, vector<32x16xf32> -> vector<32x16xf32>
    %c0_3 = arith.constant 0 : index
    %c0_4 = arith.constant 0 : index
    %3 = vector.load %arg3[%c0_3, %c0_4] : memref<1x16xf32, #tpu.memory_space<vmem>>, vector<1x16xf32>
    %4 = vector.broadcast %3 : vector<1x16xf32> to vector<32x16xf32>
    %5 = arith.addf %2, %4 : vector<32x16xf32>
    %cst_5 = arith.constant 0.000000e+00 : f32
    %6 = vector.broadcast %cst_5 : f32 to vector<32x16xf32>
    %7 = arith.maximumf %5, %6 : vector<32x16xf32>
    %8 = arith.truncf %7 : vector<32x16xf32> to vector<32x16xbf16>
    %c0_6 = arith.constant 0 : index
    %c0_7 = arith.constant 0 : index
    %9 = vector.load %arg4[%c0_6, %c0_7] : memref<32x16xbf16, #tpu.memory_space<vmem>>, vector<32x16xbf16>
    tpu.vector_store %arg4[%c0_6, %c0_7], %8 {strides = array<i32>} : memref<32x16xbf16, #tpu.memory_space<vmem>>, vector<32x16xbf16>,
    return
  }
  func.func @transform_0(%arg0: i32) -> (i32, i32) {
    %c0_i32 = arith.constant 0 : i32
    %c0_i32_0 = arith.constant 0 : i32
    return %arg0, %c0_i32 : i32, i32
  }
  func.func @transform_1(%arg0: i32) -> (i32, i32) {
    %c0_i32 = arith.constant 0 : i32
    %c0_i32_0 = arith.constant 0 : i32
    %c0_i32_1 = arith.constant 0 : i32
    return %c0_i32, %c0_i32_0 : i32, i32
  }
  func.func @transform_2(%arg0: i32) -> (i32, i32) {
    %c0_i32 = arith.constant 0 : i32
    %c0_i32_0 = arith.constant 0 : i32
    %c0_i32_1 = arith.constant 0 : i32
    return %c0_i32, %c0_i32_0 : i32, i32
  }
  func.func @transform_3(%arg0: i32) -> (i32, i32) {
    %c0_i32 = arith.constant 0 : i32
    %c0_i32_0 = arith.constant 0 : i32
    return %arg0, %c0_i32 : i32, i32
  }
}

</mosaic_0001>

<llo_original>
// kernel: proj_forward.2
$region0: #{proj_forward.2}
  #allocation0 [shape = 'u32[]', space=smem, size = 0x4, offset = 0x4, fixed_abs, tag = 'smem constant byte address 0x4 - core index']
  #allocation1 [shape = 'u32[144,128]{1,0:T(1,128)}', space=vmem, size = 0x12000, scoped, tag = 'internal scratch']
  %s0 = inlined_call_operand.vmem [shape: bf16[128,32], index: 0, kind: input, shape index: {}]
  %s1 = inlined_call_operand.vmem [shape: bf16[32,16], index: 1, kind: input, shape index: {}]
  %s2 = inlined_call_operand.vmem [shape: f32[1,16], index: 2, kind: input, shape index: {}]
  %s3 = inlined_call_operand.vmem [shape: bf16[128,16], index: 3, kind: output, shape index: {}]
  %s4 = sld [smem:[#allocation0]]
  $region45: #{proj_forward.2} parent=0
    _
  %s6 = ssub.s32 1, %s4
  %s7 = scalar_select 0, %s6, %s4
  loop: start=0, step=1, limit=6
  $region2: #{proj_forward.2} parent=0 // loop_pre_header
    _
  $region3: #{proj_forward.2} parent=0 // loop_header
    %s9 = sphi 0, %s13
    %p10 = scmp.ge.s32.totalorder %s9, 6
    %s19 = sphi 0, %s21
    %s22 = sphi 0, %s19
    %s23 = sphi 0, %s22
    %s39 = sphi 0, %s23
    %s43 = sphi 0, %s43
    %s45 = sphi 0, %s43
    %s46 = sphi 0, %s45
    %s60 = sphi 0, %s46
    %s64 = sphi 0, %s64
    %s66 = sphi 0, %s64
    %s67 = sphi 0, %s66
    %s81 = sphi 0, %s67
    %s87 = sphi 0, %s89
    %s90 = sphi 0, %s87
    %s91 = sphi 0, %s90
    %s107 = sphi 0, %s91
  $region4: #{proj_forward.2} parent=0 // loop_header_branch
    %12 = sbr.rel (%p10) target = $region8
  $region5: #{proj_forward.2} parent=0 // loop_body
    %s14 = ssub.s32 %s9, 1
    %s15 = ssub.s32 %s9, 2
    %s16 = sadd.s32 %s9, 1
    %s17 = ssub.s32 %s9, %s16
    %p18 = scmp.eq.s32.totalorder %s17, 0
    %s20 = sadd.s32 %s19, 1
    %s21 = scalar_select %p18, %s19, %s20
    %p24 = pneg %p18
    %p25 = scmp.eq.s32.totalorder %s9, 3
    %p26 = por %p24, %p25
    %p27 = scmp.ne.s32.totalorder %s19, %s22
    %p28 = scmp.eq.s32.totalorder %s9, 0
    %p29 = por %p27, %p28
    %p30 = scmp.ne.s32.totalorder %s19, %s22
    %p31 = scmp.eq.s32.totalorder %s14, 3
    %p32 = por %p30, %p31
    %p33 = scmp.ne.s32.totalorder %s22, %s23
    %p34 = scmp.eq.s32.totalorder %s14, 0
    %p35 = por %p33, %p34
    %p36 = scmp.ne.s32.totalorder %s22, %s23
    %p37 = scmp.eq.s32.totalorder %s15, 3
    %p38 = por %p36, %p37
    %p40 = scmp.ne.s32.totalorder %s23, %s39
    %p41 = scmp.eq.s32.totalorder %s15, 0
    %p42 = por %p40, %p41
    %s44 = sadd.s32 %s43, 1
    %p47 = scmp.eq.s32.totalorder %s9, 3
    %p48 = scmp.ne.s32.totalorder %s43, %s45
    %p49 = scmp.eq.s32.totalorder %s9, 0
    %p50 = por %p48, %p49
    %p51 = scmp.ne.s32.totalorder %s43, %s45
    %p52 = scmp.eq.s32.totalorder %s14, 3
    %p53 = por %p51, %p52
    %p54 = scmp.ne.s32.totalorder %s45, %s46
    %p55 = scmp.eq.s32.totalorder %s14, 0
    %p56 = por %p54, %p55
    %p57 = scmp.ne.s32.totalorder %s45, %s46
    %p58 = scmp.eq.s32.totalorder %s15, 3
    %p59 = por %p57, %p58
    %p61 = scmp.ne.s32.totalorder %s46, %s60
    %p62 = scmp.eq.s32.totalorder %s15, 0
    %p63 = por %p61, %p62
    %s65 = sadd.s32 %s64, 1
    %p68 = scmp.eq.s32.totalorder %s9, 3
    %p69 = scmp.ne.s32.totalorder %s64, %s66
    %p70 = scmp.eq.s32.totalorder %s9, 0
    %p71 = por %p69, %p70
    %p72 = scmp.ne.s32.totalorder %s64, %s66
    %p73 = scmp.eq.s32.totalorder %s14, 3
    %p74 = por %p72, %p73
    %p75 = scmp.ne.s32.totalorder %s66, %s67
    %p76 = scmp.eq.s32.totalorder %s14, 0
    %p77 = por %p75, %p76
    %p78 = scmp.ne.s32.totalorder %s66, %s67
    %p79 = scmp.eq.s32.totalorder %s15, 3
    %p80 = por %p78, %p79
    %p82 = scmp.ne.s32.totalorder %s67, %s81
    %p83 = scmp.eq.s32.totalorder %s15, 0
    %p84 = por %p82, %p83
    %s85 = ssub.s32 %s9, %s16
    %p86 = scmp.eq.s32.totalorder %s85, 0
    %s88 = sadd.s32 %s87, 1
    %s89 = scalar_select %p86, %s87, %s88
    %p92 = pneg %p86
    %p93 = scmp.eq.s32.totalorder %s9, 3
    %p94 = por %p92, %p93
    %p95 = scmp.ne.s32.totalorder %s87, %s90
    %p96 = scmp.eq.s32.totalorder %s9, 0
    %p97 = por %p95, %p96
    %p98 = scmp.ne.s32.totalorder %s87, %s90
    %p99 = scmp.eq.s32.totalorder %s14, 3
    %p100 = por %p98, %p99
    %p101 = scmp.ne.s32.totalorder %s90, %s91
    %p102 = scmp.eq.s32.totalorder %s14, 0
    %p103 = por %p101, %p102
    %p104 = scmp.ne.s32.totalorder %s90, %s91
    %p105 = scmp.eq.s32.totalorder %s15, 3
    %p106 = por %p104, %p105
    %p108 = scmp.ne.s32.totalorder %s91, %s107
    %p109 = scmp.eq.s32.totalorder %s15, 0
    %p110 = por %p108, %p109
    %p111 = scmp.le.s32.totalorder 1, %s9
    %p112 = scmp.lt.s32.totalorder %s9, 5
    %p113 = pnand %p111, %p112
    %p114 = pneg %p113
    // Predicated region
    $region9: #{proj_forward.2} parent=5 // pred_check
      _
    $region10: #{proj_forward.2} parent=5 // pred_check_branch
      %116 = sbr.rel (%p113) target = $region12
    $region11: #{proj_forward.2} parent=5 // pred_region
      %s117 = ssub.s32 %s9, 1
      // Predicated region
      $region13: #{proj_forward.2} parent=11 // pred_check
        %p118 = pneg %p56
      $region14: #{proj_forward.2} parent=11 // pred_check_branch
        %120 = sbr.rel (%p118) target = $region16
      $region15: #{proj_forward.2} parent=11 // pred_region
        _
      $region16: #{proj_forward.2} parent=11 // pred_fallthru
        _
      // Predicated region
      $region17: #{proj_forward.2} parent=11 // pred_check
        %p121 = pneg %p77
      $region18: #{proj_forward.2} parent=11 // pred_check_branch
        %123 = sbr.rel (%p121) target = $region20
      $region19: #{proj_forward.2} parent=11 // pred_region
        _
      $region20: #{proj_forward.2} parent=11 // pred_fallthru
        _
    $region12: #{proj_forward.2} parent=5 // pred_fallthru
      _
    %p124 = scmp.lt.s32.totalorder %s9, 4
    // Predicated region
    $region21: #{proj_forward.2} parent=5 // pred_check
      %p125 = pneg %p124
    $region22: #{proj_forward.2} parent=5 // pred_check_branch
      %127 = sbr.rel (%p125) target = $region24
    $region23: #{proj_forward.2} parent=5 // pred_region
      // Predicated region
      $region25: #{proj_forward.2} parent=23 // pred_check
        %p128 = pneg %p29
      $region26: #{proj_forward.2} parent=23 // pred_check_branch
        %130 = sbr.rel (%p128) target = $region28
      $region27: #{proj_forward.2} parent=23 // pred_region
        %s131 = smul.u32 4, %s9
        %p132 = scmp.lt.s32.totalorder %s131, 15
        %s133 = scalar_select %p132, %s131, 15
        %s134 = smul.addr %s133, 4
        %s135 = scalar_lea.vmem %s0, %s134
        %s136 = smul.u32 4, %s9
      $region28: #{proj_forward.2} parent=23 // pred_fallthru
        _
    $region24: #{proj_forward.2} parent=5 // pred_fallthru
      _
    %p137 = scmp.le.s32.totalorder 1, %s9
    %p138 = scmp.lt.s32.totalorder %s9, 5
    %p139 = pnand %p137, %p138
    %p140 = pneg %p139
    // Predicated region
    $region29: #{proj_forward.2} parent=5 // pred_check
      _
    $region30: #{proj_forward.2} parent=5 // pred_check_branch
      %142 = sbr.rel (%p139) target = $region32
    $region31: #{proj_forward.2} parent=5 // pred_region
      %s143 = ssub.s32 %s9, 1
      %s144 = smul.u32 4, %s14
      %p145 = scmp.lt.s32.totalorder %s144, 15
      %s146 = scalar_select %p145, %s144, 15
      %s147 = smul.addr %s146, 4
      %s148 = scalar_lea.vmem %s0, %s147
      %p149 = pneg %p35
      %p150 = pneg %p32
      %p151 = pneg %p56
      %p152 = pneg %p53
      %p153 = pneg %p77
      %p154 = pneg %p74
      %p155 = pneg %p103
      %p156 = pneg %p100
      %s157 = smul.u32 4, %s14
      %p158 = scmp.lt.s32.totalorder %s157, 15
      %s159 = scalar_select %p158, %s157, 15
      %s160 = smul.addr %s159, 4
      %s161 = scalar_lea.vmem %s3, %s160
      %s162 = smul.u32 4, %s14
      %p163 = scmp.lt.s32.totalorder %s162, 15
      %s164 = scalar_select %p163, %s162, 15
      %s165 = smul.addr %s164, 4
      %s166 = scalar_lea.vmem %s0, %s165
      %s167 = smul.u32 4, %s14
      %s168 = smul.u32 4, %s14
      %p169 = scmp.lt.s32.totalorder %s168, 15
      %s170 = scalar_select %p169, %s168, 15
      %s171 = smul.addr %s170, 4
      %s172 = scalar_lea.vmem %s3, %s171
      %s173 = smul.u32 4, %s14
      %v175 = vld [vmem:[%s166] sm:$0xf]
      %v176 = vld [vmem:[%s166 + $0x4] sm:$0xf]
      %v177 = vld [vmem:[%s166 + $0x8] sm:$0xf]
      %v178 = vld [vmem:[%s166 + $0xc] sm:$0xf]
      %v179 = vld [vmem:[%s1] sm:$0xf]
      %v180 = vld [vmem:[%s1 + $0x4] sm:$0xf]
      %v181 = vld [vmem:[%s1 + $0x8] sm:$0xf]
      %v182 = vld [vmem:[%s1 + $0xc] sm:$0xf]
      %v183 = vld [vmem:[%s2] sm:$0x1]
      %v185 = vlaneseq
      %v186 = vshrl.u32 %v185, 7
      %v187 = vsub.s32 0, %v186
      %v188 = vrot.slane %v183, %v187
      %v194 = vunpack.c.l.b16 %v175
      %v195 = vunpack.c.l.b16 %v176
      %v196 = vunpack.c.l.b16 %v177
      %v197 = vunpack.c.l.b16 %v178
      %v198 = vpack.c.b16 %v195, %v194
      %v199 = vpack.c.b16 %v197, %v196
      %v204 = vunpack.c.l.b16 %v179
      %v205 = vunpack.c.l.b16 %v180
      %v206 = vunpack.c.l.b16 %v181
      %v207 = vunpack.c.l.b16 %v182
      %v208 = vpack.c.b16 %v205, %v204
      %v209 = vpack.c.b16 %v207, %v206
      %vm212 = vcmask 261120
      %v214 = vsel %vm212, %v198, 0
      %v217 = vsel %vm212, %v199, 0
      %219 = vmatprep.subr.bf16.mxu0 0
      %220 = vmatpush1.bf16.msra.mxu0 0
      %221 = vmatprep.subr.bf16.mxu0 0
      %222 = vmatpush1.bf16.msra.mxu0 0
      %223 = vmatprep.subr.bf16.mxu0 0
      %224 = vmatpush1.bf16.msra.mxu0 0
      %225 = vmatprep.subr.bf16.mxu0 0
      %226 = vmatpush1.bf16.msra.mxu0 0
      %227 = vmatprep.subr.bf16.mxu0 0
      %228 = vmatpush1.bf16.msra.mxu0 0
      %229 = vmatprep.subr.bf16.mxu0 0
      %230 = vmatpush1.bf16.msra.mxu0 0
      %231 = vmatprep.subr.bf16.mxu0 0
      %232 = vmatpush1.bf16.msra.mxu0 %v209
      %233 = vmatprep.subr.bf16.mxu0 0
      %234 = vmatpush1.bf16.msra.mxu0 %v208
      %235 = vmatprep.subr.bf16.mxu0 0
      %236 = vmatpush2.bf16.msra.mxu0 0
      %237 = vmatprep.subr.bf16.mxu0 0
      %238 = vmatpush2.bf16.msra.mxu0 0
      %239 = vmatprep.subr.bf16.mxu0 0
      %240 = vmatpush2.bf16.msra.mxu0 0
      %241 = vmatprep.subr.bf16.mxu0 0
      %242 = vmatpush2.bf16.msra.mxu0 0
      %243 = vmatprep.subr.bf16.mxu0 0
      %244 = vmatpush2.bf16.msra.mxu0 0
      %245 = vmatprep.subr.bf16.mxu0 0
      %246 = vmatpush2.bf16.msra.mxu0 0
      %247 = vmatprep.subr.bf16.mxu0 0
      %248 = vmatpush2.bf16.msra.mxu0 0
      %249 = vmatprep.subr.bf16.mxu0 0
      %250 = vmatpush2.bf16.msra.mxu0 0
      %251 = vmatprep.mubr.bf16.mxu0 0
      %252 = vmatmul.mubr.bf16.gmra.mxu0 %v214
      %v253 = vpop.f32.mrf.mxu0
      %v254 = vadd.f32 %v188, %v253
      %v255 = vpop.f32.mrf.mxu0
      %v256 = vpop.f32.mrf.mxu0
      %v257 = vadd.f32 %v188, %v256
      %v258 = vpop.f32.mrf.mxu0
      %259 = vmatprep.mubr.bf16.mxu0 0
      %260 = vmatmul.mubr.bf16.gmra.mxu0 %v217
      %v261 = vpop.f32.mrf.mxu0
      %v262 = vadd.f32 %v188, %v261
      %v263 = vpop.f32.mrf.mxu0
      %v264 = vpop.f32.mrf.mxu0
      %v265 = vadd.f32 %v188, %v264
      %v266 = vpop.f32.mrf.mxu0
      %267 = vdwg.mxu0
      %v268 = vmax.f32 %v254, 0.0
      %v269 = vmax.f32 %v257, 0.0
      %v270 = vmax.f32 %v262, 0.0
      %v271 = vmax.f32 %v265, 0.0
      %v272 = vpack.c.bf16 %v269, %v268
      %v273 = vpack.c.bf16 %v271, %v270
      %v276 = vunpack.c.l.b16 %v272
      %v277 = vunpack.c.h.b16 %v272
      %v278 = vunpack.c.l.b16 %v273
      %v279 = vunpack.c.h.b16 %v273
      %v280 = vpack.c.b16 %v276, %v276
      %v281 = vpack.c.b16 %v277, %v277
      %v282 = vpack.c.b16 %v278, %v278
      %v283 = vpack.c.b16 %v279, %v279
      %vm288 = vcmask 125952
      %289 = vst.msk [vmem:[%s172] sm:$0xf] %vm288, %v280
      %290 = vst.msk [vmem:[%s172 + $0x4] sm:$0xf] %vm288, %v281
      %291 = vst.msk [vmem:[%s172 + $0x8] sm:$0xf] %vm288, %v282
      %292 = vst.msk [vmem:[%s172 + $0xc] sm:$0xf] %vm288, %v283
      %s293 = smul.u32 4, %s14
      %p294 = scmp.lt.s32.totalorder %s293, 15
      %s295 = scalar_select %p294, %s293, 15
      %s296 = smul.addr %s295, 4
      %s297 = scalar_lea.vmem %s3, %s296
      // Predicated region
      $region33: #{proj_forward.2} parent=31 // pred_check
        %p298 = pneg %p100
      $region34: #{proj_forward.2} parent=31 // pred_check_branch
        %300 = sbr.rel (%p298) target = $region36
      $region35: #{proj_forward.2} parent=31 // pred_region
        %s301 = smul.u32 4, %s14
      $region36: #{proj_forward.2} parent=31 // pred_fallthru
        _
    $region32: #{proj_forward.2} parent=5 // pred_fallthru
      _
    %p302 = scmp.le.s32.totalorder 2, %s9
    // Predicated region
    $region37: #{proj_forward.2} parent=5 // pred_check
      %p303 = pneg %p302
    $region38: #{proj_forward.2} parent=5 // pred_check_branch
      %305 = sbr.rel (%p303) target = $region40
    $region39: #{proj_forward.2} parent=5 // pred_region
      %s306 = ssub.s32 %s9, 2
      // Predicated region
      $region41: #{proj_forward.2} parent=39 // pred_check
        %p307 = pneg %p106
      $region42: #{proj_forward.2} parent=39 // pred_check_branch
        %309 = sbr.rel (%p307) target = $region44
      $region43: #{proj_forward.2} parent=39 // pred_region
        %s310 = smul.u32 4, %s15
        %p311 = scmp.lt.s32.totalorder %s310, 15
        %s312 = scalar_select %p311, %s310, 15
        %s313 = smul.addr %s312, 4
        %s314 = scalar_lea.vmem %s3, %s313
      $region44: #{proj_forward.2} parent=39 // pred_fallthru
        _
    $region40: #{proj_forward.2} parent=5 // pred_fallthru
      _
  $region6: #{proj_forward.2} parent=0 // loop_footer
    %s13 = sadd.s32 1, %s9
  $region7: #{proj_forward.2} parent=0 // loop_footer_branch
    %8 = sbr.rel target = $region3
  $region8: #{proj_forward.2} parent=0 // loop_exit
    _

// kernel: proj_forward.3
$region0: #{proj_forward.3}
  #allocation0 [shape = 'u32[]', space=smem, size = 0x4, offset = 0x4, fixed_abs, tag = 'smem constant byte address 0x4 - core index']
  #allocation1 [shape = 'u32[144,128]{1,0:T(1,128)}', space=vmem, size = 0x12000, scoped, tag = 'internal scratch']
  #allocation2 [shape = 'f32[10,10,16]{2,1,0:T(8,128)}', space=vmem, size = 0x14000, scoped, tag = 'scratch operand']
  %s0 = inlined_call_operand.vmem [shape: bf16[2,8,8,16], index: 0, kind: input, shape index: {}, may-alias: {0,1,2}]
  %s1 = inlined_call_operand.vmem [shape: bf16[2,8,8,16], index: 1, kind: input, shape index: {}, may-alias: {0,1,2}]
  %s2 = inlined_call_operand.vmem [shape: bf16[2,8,8,16], index: 2, kind: input, shape index: {}, may-alias: {0,1,2}]
  %s3 = inlined_call_operand.vmem [shape: bf16[3,3,16,16], index: 3, kind: input, shape index: {}]
  %s4 = inlined_call_operand.vmem [shape: f32[1,16], index: 4, kind: input, shape index: {}]
  %s5 = inlined_call_operand.vmem [shape: bf16[16,8], index: 5, kind: input, shape index: {}]
  %s6 = inlined_call_operand.vmem [shape: f32[2,8,8,8], index: 6, kind: output, shape index: {}]
  %s7 = sld [smem:[#allocation0]]
  $region57: #{proj_forward.3} parent=0
    _
  %s9 = ssub.s32 1, %s7
  %s10 = scalar_select 0, %s9, %s7
  loop: start=0, step=1, limit=4
  $region2: #{proj_forward.3} parent=0 // loop_pre_header
    _
  $region3: #{proj_forward.3} parent=0 // loop_header
    %s12 = sphi 0, %s16
    %p13 = scmp.ge.s32.totalorder %s12, 4
    %s19 = sphi 0, %s31
    %s20 = sphi 0, %s27
    %s21 = sphi 0, %s19
    %s22 = sphi 0, %s20
    %s23 = sphi 0, %s21
    %s24 = sphi 0, %s22
    %s36 = sphi 0, %s38
    %s39 = sphi 0, %s36
    %s40 = sphi 0, %s39
    %s56 = sphi 0, %s40
    %s72 = sphi 0, %s74
    %s75 = sphi 0, %s72
    %s76 = sphi 0, %s75
    %s92 = sphi 0, %s76
    %s108 = sphi 0, %s110
    %s111 = sphi 0, %s108
    %s112 = sphi 0, %s111
    %s128 = sphi 0, %s112
    %s132 = sphi 0, %s132
    %s134 = sphi 0, %s132
    %s135 = sphi 0, %s134
    %s149 = sphi 0, %s135
    %s153 = sphi 0, %s153
    %s155 = sphi 0, %s153
    %s156 = sphi 0, %s155
    %s170 = sphi 0, %s156
    %s174 = sphi 0, %s174
    %s176 = sphi 0, %s174
    %s177 = sphi 0, %s176
    %s191 = sphi 0, %s177
    %s199 = sphi 0, %s201
    %s202 = sphi 0, %s199
    %s203 = sphi 0, %s202
    %s219 = sphi 0, %s203
  $region4: #{proj_forward.3} parent=0 // loop_header_branch
    %15 = sbr.rel (%p13) target = $region8
  $region5: #{proj_forward.3} parent=0 // loop_body
    %s17 = ssub.s32 %s12, 1
    %s18 = ssub.s32 %s12, 2
    %s25 = sadd.s32 1, %s20
    %p26 = scmp.ge.s32.totalorder %s25, 1
    %s27 = scalar_select %p26, 0, %s25
    %s28 = sadd.s32 1, %s19
    %s29 = scalar_select %p26, %s28, %s19
    %p30 = scmp.ge.s32.totalorder %s29, 2
    %s31 = scalar_select %p30, 0, %s29
    %s32 = ssub.s32 %s19, %s31
    %s33 = ssub.s32 %s20, %s27
    %s34 = sor.u32 %s32, %s33
    %p35 = scmp.eq.s32.totalorder %s34, 0
    %s37 = sadd.s32 %s36, 1
    %s38 = scalar_select %p35, %s36, %s37
    %p41 = pneg %p35
    %p42 = scmp.eq.s32.totalorder %s12, 1
    %p43 = por %p41, %p42
    %p44 = scmp.ne.s32.totalorder %s36, %s39
    %p45 = scmp.eq.s32.totalorder %s12, 0
    %p46 = por %p44, %p45
    %p47 = scmp.ne.s32.totalorder %s36, %s39
    %p48 = scmp.eq.s32.totalorder %s17, 1
    %p49 = por %p47, %p48
    %p50 = scmp.ne.s32.totalorder %s39, %s40
    %p51 = scmp.eq.s32.totalorder %s17, 0
    %p52 = por %p50, %p51
    %p53 = scmp.ne.s32.totalorder %s39, %s40
    %p54 = scmp.eq.s32.totalorder %s18, 1
    %p55 = por %p53, %p54
    %p57 = scmp.ne.s32.totalorder %s40, %s56
    %p58 = scmp.eq.s32.totalorder %s18, 0
    %p59 = por %p57, %p58
    %s60 = smul.u32 %s20, 8
    %s61 = ssub.s32 %s60, 1
    %p62 = scmp.gt.s32.totalorder %s61, 0
    %s63 = scalar_select %p62, %s61, 0
    %s64 = smul.u32 %s27, 8
    %s65 = ssub.s32 %s64, 1
    %p66 = scmp.gt.s32.totalorder %s65, 0
    %s67 = scalar_select %p66, %s65, 0
    %s68 = ssub.s32 %s19, %s31
    %s69 = ssub.s32 %s63, %s67
    %s70 = sor.u32 %s68, %s69
    %p71 = scmp.eq.s32.totalorder %s70, 0
    %s73 = sadd.s32 %s72, 1
    %s74 = scalar_select %p71, %s72, %s73
    %p77 = pneg %p71
    %p78 = scmp.eq.s32.totalorder %s12, 1
    %p79 = por %p77, %p78
    %p80 = scmp.ne.s32.totalorder %s72, %s75
    %p81 = scmp.eq.s32.totalorder %s12, 0
    %p82 = por %p80, %p81
    %p83 = scmp.ne.s32.totalorder %s72, %s75
    %p84 = scmp.eq.s32.totalorder %s17, 1
    %p85 = por %p83, %p84
    %p86 = scmp.ne.s32.totalorder %s75, %s76
    %p87 = scmp.eq.s32.totalorder %s17, 0
    %p88 = por %p86, %p87
    %p89 = scmp.ne.s32.totalorder %s75, %s76
    %p90 = scmp.eq.s32.totalorder %s18, 1
    %p91 = por %p89, %p90
    %p93 = scmp.ne.s32.totalorder %s76, %s92
    %p94 = scmp.eq.s32.totalorder %s18, 0
    %p95 = por %p93, %p94
    %s96 = sadd.s32 %s20, 1
    %s97 = smul.u32 %s96, 8
    %p98 = scmp.lt.s32.totalorder %s97, 7
    %s99 = scalar_select %p98, %s97, 7
    %s100 = sadd.s32 %s27, 1
    %s101 = smul.u32 %s100, 8
    %p102 = scmp.lt.s32.totalorder %s101, 7
    %s103 = scalar_select %p102, %s101, 7
    %s104 = ssub.s32 %s19, %s31
    %s105 = ssub.s32 %s99, %s103
    %s106 = sor.u32 %s104, %s105
    %p107 = scmp.eq.s32.totalorder %s106, 0
    %s109 = sadd.s32 %s108, 1
    %s110 = scalar_select %p107, %s108, %s109
    %p113 = pneg %p107
    %p114 = scmp.eq.s32.totalorder %s12, 1
    %p115 = por %p113, %p114
    %p116 = scmp.ne.s32.totalorder %s108, %s111
    %p117 = scmp.eq.s32.totalorder %s12, 0
    %p118 = por %p116, %p117
    %p119 = scmp.ne.s32.totalorder %s108, %s111
    %p120 = scmp.eq.s32.totalorder %s17, 1
    %p121 = por %p119, %p120
    %p122 = scmp.ne.s32.totalorder %s111, %s112
    %p123 = scmp.eq.s32.totalorder %s17, 0
    %p124 = por %p122, %p123
    %p125 = scmp.ne.s32.totalorder %s111, %s112
    %p126 = scmp.eq.s32.totalorder %s18, 1
    %p127 = por %p125, %p126
    %p129 = scmp.ne.s32.totalorder %s112, %s128
    %p130 = scmp.eq.s32.totalorder %s18, 0
    %p131 = por %p129, %p130
    %s133 = sadd.s32 %s132, 1
    %p136 = scmp.eq.s32.totalorder %s12, 1
    %p137 = scmp.ne.s32.totalorder %s132, %s134
    %p138 = scmp.eq.s32.totalorder %s12, 0
    %p139 = por %p137, %p138
    %p140 = scmp.ne.s32.totalorder %s132, %s134
    %p141 = scmp.eq.s32.totalorder %s17, 1
    %p142 = por %p140, %p141
    %p143 = scmp.ne.s32.totalorder %s134, %s135
    %p144 = scmp.eq.s32.totalorder %s17, 0
    %p145 = por %p143, %p144
    %p146 = scmp.ne.s32.totalorder %s134, %s135
    %p147 = scmp.eq.s32.totalorder %s18, 1
    %p148 = por %p146, %p147
    %p150 = scmp.ne.s32.totalorder %s135, %s149
    %p151 = scmp.eq.s32.totalorder %s18, 0
    %p152 = por %p150, %p151
    %s154 = sadd.s32 %s153, 1
    %p157 = scmp.eq.s32.totalorder %s12, 1
    %p158 = scmp.ne.s32.totalorder %s153, %s155
    %p159 = scmp.eq.s32.totalorder %s12, 0
    %p160 = por %p158, %p159
    %p161 = scmp.ne.s32.totalorder %s153, %s155
    %p162 = scmp.eq.s32.totalorder %s17, 1
    %p163 = por %p161, %p162
    %p164 = scmp.ne.s32.totalorder %s155, %s156
    %p165 = scmp.eq.s32.totalorder %s17, 0
    %p166 = por %p164, %p165
    %p167 = scmp.ne.s32.totalorder %s155, %s156
    %p168 = scmp.eq.s32.totalorder %s18, 1
    %p169 = por %p167, %p168
    %p171 = scmp.ne.s32.totalorder %s156, %s170
    %p172 = scmp.eq.s32.totalorder %s18, 0
    %p173 = por %p171, %p172
    %s175 = sadd.s32 %s174, 1
    %p178 = scmp.eq.s32.totalorder %s12, 1
    %p179 = scmp.ne.s32.totalorder %s174, %s176
    %p180 = scmp.eq.s32.totalorder %s12, 0
    %p181 = por %p179, %p180
    %p182 = scmp.ne.s32.totalorder %s174, %s176
    %p183 = scmp.eq.s32.totalorder %s17, 1
    %p184 = por %p182, %p183
    %p185 = scmp.ne.s32.totalorder %s176, %s177
    %p186 = scmp.eq.s32.totalorder %s17, 0
    %p187 = por %p185, %p186
    %p188 = scmp.ne.s32.totalorder %s176, %s177
    %p189 = scmp.eq.s32.totalorder %s18, 1
    %p190 = por %p188, %p189
    %p192 = scmp.ne.s32.totalorder %s177, %s191
    %p193 = scmp.eq.s32.totalorder %s18, 0
    %p194 = por %p192, %p193
    %s195 = ssub.s32 %s19, %s31
    %s196 = ssub.s32 %s20, %s27
    %s197 = sor.u32 %s195, %s196
    %p198 = scmp.eq.s32.totalorder %s197, 0
    %s200 = sadd.s32 %s199, 1
    %s201 = scalar_select %p198, %s199, %s200
    %p204 = pneg %p198
    %p205 = scmp.eq.s32.totalorder %s12, 1
    %p206 = por %p204, %p205
    %p207 = scmp.ne.s32.totalorder %s199, %s202
    %p208 = scmp.eq.s32.totalorder %s12, 0
    %p209 = por %p207, %p208
    %p210 = scmp.ne.s32.totalorder %s199, %s202
    %p211 = scmp.eq.s32.totalorder %s17, 1
    %p212 = por %p210, %p211
    %p213 = scmp.ne.s32.totalorder %s202, %s203
    %p214 = scmp.eq.s32.totalorder %s17, 0
    %p215 = por %p213, %p214
    %p216 = scmp.ne.s32.totalorder %s202, %s203
    %p217 = scmp.eq.s32.totalorder %s18, 1
    %p218 = por %p216, %p217
    %p220 = scmp.ne.s32.totalorder %s203, %s219
    %p221 = scmp.eq.s32.totalorder %s18, 0
    %p222 = por %p220, %p221
    %p223 = scmp.le.s32.totalorder 1, %s12
    %p224 = scmp.lt.s32.totalorder %s12, 3
    %p225 = pnand %p223, %p224
    %p226 = pneg %p225
    // Predicated region
    $region9: #{proj_forward.3} parent=5 // pred_check
      _
    $region10: #{proj_forward.3} parent=5 // pred_check_branch
      %228 = sbr.rel (%p225) target = $region12
    $region11: #{proj_forward.3} parent=5 // pred_region
      %s229 = ssub.s32 %s12, 1
      // Predicated region
      $region13: #{proj_forward.3} parent=11 // pred_check
        %p230 = pneg %p145
      $region14: #{proj_forward.3} parent=11 // pred_check_branch
        %232 = sbr.rel (%p230) target = $region16
      $region15: #{proj_forward.3} parent=11 // pred_region
        _
      $region16: #{proj_forward.3} parent=11 // pred_fallthru
        _
      // Predicated region
      $region17: #{proj_forward.3} parent=11 // pred_check
        %p233 = pneg %p166
      $region18: #{proj_forward.3} parent=11 // pred_check_branch
        %235 = sbr.rel (%p233) target = $region20
      $region19: #{proj_forward.3} parent=11 // pred_region
        _
      $region20: #{proj_forward.3} parent=11 // pred_fallthru
        _
      // Predicated region
      $region21: #{proj_forward.3} parent=11 // pred_check
        %p236 = pneg %p187
      $region22: #{proj_forward.3} parent=11 // pred_check_branch
        %238 = sbr.rel (%p236) target = $region24
      $region23: #{proj_forward.3} parent=11 // pred_region
        _
      $region24: #{proj_forward.3} parent=11 // pred_fallthru
        _
    $region12: #{proj_forward.3} parent=5 // pred_fallthru
      _
    %p239 = scmp.lt.s32.totalorder %s12, 2
    // Predicated region
    $region25: #{proj_forward.3} parent=5 // pred_check
      %p240 = pneg %p239
    $region26: #{proj_forward.3} parent=5 // pred_check_branch
      %242 = sbr.rel (%p240) target = $region28
    $region27: #{proj_forward.3} parent=5 // pred_region
      // Predicated region
      $region29: #{proj_forward.3} parent=27 // pred_check
        %p243 = pneg %p46
      $region30: #{proj_forward.3} parent=27 // pred_check_branch
        %245 = sbr.rel (%p243) target = $region32
      $region31: #{proj_forward.3} parent=27 // pred_region
        %s246 = smul.u32 8, %s20
        %p247 = scmp.lt.s32.totalorder %s19, 1
        %s248 = scalar_select %p247, %s19, 1
        %p249 = scmp.lt.s32.totalorder %s246, 7
        %s250 = scalar_select %p249, %s246, 7
        %s251 = smul.addr %s248, 8
        %s252 = sadd.s32 %s250, %s251
        %s253 = smul.addr %s252, 4
        %s254 = scalar_lea.vmem %s0, %s253
        %s255 = smul.u32 8, %s20
      $region32: #{proj_forward.3} parent=27 // pred_fallthru
        _
      // Predicated region
      $region33: #{proj_forward.3} parent=27 // pred_check
        %p256 = pneg %p82
      $region34: #{proj_forward.3} parent=27 // pred_check_branch
        %258 = sbr.rel (%p256) target = $region36
      $region35: #{proj_forward.3} parent=27 // pred_region
        %s259 = smul.u32 %s20, 8
        %s260 = ssub.s32 %s259, 1
        %p261 = scmp.gt.s32.totalorder %s260, 0
        %s262 = scalar_select %p261, %s260, 0
        %p263 = scmp.lt.s32.totalorder %s19, 1
        %s264 = scalar_select %p263, %s19, 1
        %p265 = scmp.lt.s32.totalorder %s262, 7
        %s266 = scalar_select %p265, %s262, 7
        %s267 = smul.addr %s264, 8
        %s268 = sadd.s32 %s266, %s267
        %s269 = smul.addr %s268, 4
        %s270 = scalar_lea.vmem %s1, %s269
        %s271 = smul.u32 %s20, 8
        %s272 = ssub.s32 %s271, 1
        %p273 = scmp.gt.s32.totalorder %s272, 0
        %s274 = scalar_select %p273, %s272, 0
      $region36: #{proj_forward.3} parent=27 // pred_fallthru
        _
      // Predicated region
      $region37: #{proj_forward.3} parent=27 // pred_check
        %p275 = pneg %p118
      $region38: #{proj_forward.3} parent=27 // pred_check_branch
        %277 = sbr.rel (%p275) target = $region40
      $region39: #{proj_forward.3} parent=27 // pred_region
        %s278 = sadd.s32 %s20, 1
        %s279 = smul.u32 %s278, 8
        %p280 = scmp.lt.s32.totalorder %s279, 7
        %s281 = scalar_select %p280, %s279, 7
        %p282 = scmp.lt.s32.totalorder %s19, 1
        %s283 = scalar_select %p282, %s19, 1
        %p284 = scmp.lt.s32.totalorder %s281, 7
        %s285 = scalar_select %p284, %s281, 7
        %s286 = smul.addr %s283, 8
        %s287 = sadd.s32 %s285, %s286
        %s288 = smul.addr %s287, 4
        %s289 = scalar_lea.vmem %s2, %s288
        %s290 = sadd.s32 %s20, 1
        %s291 = smul.u32 %s290, 8
        %p292 = scmp.lt.s32.totalorder %s291, 7
        %s293 = scalar_select %p292, %s291, 7
      $region40: #{proj_forward.3} parent=27 // pred_fallthru
        _
    $region28: #{proj_forward.3} parent=5 // pred_fallthru
      _
    %p294 = scmp.le.s32.totalorder 1, %s12
    %p295 = scmp.lt.s32.totalorder %s12, 3
    %p296 = pnand %p294, %p295
    %p297 = pneg %p296
    // Predicated region
    $region41: #{proj_forward.3} parent=5 // pred_check
      _
    $region42: #{proj_forward.3} parent=5 // pred_check_branch
      %299 = sbr.rel (%p296) target = $region44
    $region43: #{proj_forward.3} parent=5 // pred_region
      %s300 = ssub.s32 %s12, 1
      %s301 = smul.u32 8, %s22
      %p302 = scmp.lt.s32.totalorder %s21, 1
      %s303 = scalar_select %p302, %s21, 1
      %p304 = scmp.lt.s32.totalorder %s301, 7
      %s305 = scalar_select %p304, %s301, 7
      %s306 = smul.addr %s303, 8
      %s307 = sadd.s32 %s305, %s306
      %s308 = smul.addr %s307, 4
      %s309 = scalar_lea.vmem %s0, %s308
      %p310 = pneg %p52
      %p311 = pneg %p49
      %s312 = smul.u32 %s22, 8
      %s313 = ssub.s32 %s312, 1
      %p314 = scmp.gt.s32.totalorder %s313, 0
      %s315 = scalar_select %p314, %s313, 0
      %p316 = scmp.lt.s32.totalorder %s21, 1
      %s317 = scalar_select %p316, %s21, 1
      %p318 = scmp.lt.s32.totalorder %s315, 7
      %s319 = scalar_select %p318, %s315, 7
      %s320 = smul.addr %s317, 8
      %s321 = sadd.s32 %s319, %s320
      %s322 = smul.addr %s321, 4
      %s323 = scalar_lea.vmem %s1, %s322
      %p324 = pneg %p88
      %p325 = pneg %p85
      %s326 = sadd.s32 %s22, 1
      %s327 = smul.u32 %s326, 8
      %p328 = scmp.lt.s32.totalorder %s327, 7
      %s329 = scalar_select %p328, %s327, 7
      %p330 = scmp.lt.s32.totalorder %s21, 1
      %s331 = scalar_select %p330, %s21, 1
      %p332 = scmp.lt.s32.totalorder %s329, 7
      %s333 = scalar_select %p332, %s329, 7
      %s334 = smul.addr %s331, 8
      %s335 = sadd.s32 %s333, %s334
      %s336 = smul.addr %s335, 4
      %s337 = scalar_lea.vmem %s2, %s336
      %p338 = pneg %p124
      %p339 = pneg %p121
      %p340 = pneg %p145
      %p341 = pneg %p142
      %p342 = pneg %p166
      %p343 = pneg %p163
      %p344 = pneg %p187
      %p345 = pneg %p184
      %p346 = pneg %p215
      %p347 = pneg %p212
      %s348 = smul.u32 8, %s22
      %p349 = scmp.lt.s32.totalorder %s21, 1
      %s350 = scalar_select %p349, %s21, 1
      %p351 = scmp.lt.s32.totalorder %s348, 7
      %s352 = scalar_select %p351, %s348, 7
      %s353 = smul.addr %s350, 8
      %s354 = sadd.s32 %s352, %s353
      %s355 = smul.addr %s354, 8
      %s356 = scalar_lea.vmem %s6, %s355
      %s357 = smul.u32 8, %s22
      %p358 = scmp.lt.s32.totalorder %s21, 1
      %s359 = scalar_select %p358, %s21, 1
      %p360 = scmp.lt.s32.totalorder %s357, 7
      %s361 = scalar_select %p360, %s357, 7
      %s362 = smul.addr %s359, 8
      %s363 = sadd.s32 %s361, %s362
      %s364 = smul.addr %s363, 4
      %s365 = scalar_lea.vmem %s0, %s364
      %s366 = smul.u32 8, %s22
      %s367 = smul.u32 %s22, 8
      %s368 = ssub.s32 %s367, 1
      %p369 = scmp.gt.s32.totalorder %s368, 0
      %s370 = scalar_select %p369, %s368, 0
      %p371 = scmp.lt.s32.totalorder %s21, 1
      %s372 = scalar_select %p371, %s21, 1
      %p373 = scmp.lt.s32.totalorder %s370, 7
      %s374 = scalar_select %p373, %s370, 7
      %s375 = smul.addr %s372, 8
      %s376 = sadd.s32 %s374, %s375
      %s377 = smul.addr %s376, 4
      %s378 = scalar_lea.vmem %s1, %s377
      %s379 = smul.u32 %s22, 8
      %s380 = ssub.s32 %s379, 1
      %p381 = scmp.gt.s32.totalorder %s380, 0
      %s382 = scalar_select %p381, %s380, 0
      %s383 = sadd.s32 %s22, 1
      %s384 = smul.u32 %s383, 8
      %p385 = scmp.lt.s32.totalorder %s384, 7
      %s386 = scalar_select %p385, %s384, 7
      %p387 = scmp.lt.s32.totalorder %s21, 1
      %s388 = scalar_select %p387, %s21, 1
      %p389 = scmp.lt.s32.totalorder %s386, 7
      %s390 = scalar_select %p389, %s386, 7
      %s391 = smul.addr %s388, 8
      %s392 = sadd.s32 %s390, %s391
      %s393 = smul.addr %s392, 4
      %s394 = scalar_lea.vmem %s2, %s393
      %s395 = sadd.s32 %s22, 1
      %s396 = smul.u32 %s395, 8
      %p397 = scmp.lt.s32.totalorder %s396, 7
      %s398 = scalar_select %p397, %s396, 7
      %s399 = smul.u32 8, %s22
      %p400 = scmp.lt.s32.totalorder %s21, 1
      %s401 = scalar_select %p400, %s21, 1
      %p402 = scmp.lt.s32.totalorder %s399, 7
      %s403 = scalar_select %p402, %s399, 7
      %s404 = smul.addr %s401, 8
      %s405 = sadd.s32 %s403, %s404
      %s406 = smul.addr %s405, 8
      %s407 = scalar_lea.vmem %s6, %s406
      %s408 = smul.u32 8, %s22
      %vm410 = vcmask 130048
      %411 = vst.msk [vmem:[#allocation2] sm:$0xff] %vm410, 0.0
      %vm412 = vcmask 123904
      %413 = vst.msk [vmem:[#allocation2 + $0x8] sm:$0x3] %vm412, 0.0
      %414 = vst.msk [vmem:[#allocation2 + $0x10] sm:$0xff] %vm410, 0.0
      %415 = vst.msk [vmem:[#allocation2 + $0x18] sm:$0x3] %vm412, 0.0
      %416 = vst.msk [vmem:[#allocation2 + $0x20] sm:$0xff] %vm410, 0.0
      %417 = vst.msk [vmem:[#allocation2 + $0x28] sm:$0x3] %vm412, 0.0
      %418 = vst.msk [vmem:[#allocation2 + $0x30] sm:$0xff] %vm410, 0.0
      %419 = vst.msk [vmem:[#allocation2 + $0x38] sm:$0x3] %vm412, 0.0
      %420 = vst.msk [vmem:[#allocation2 + $0x40] sm:$0xff] %vm410, 0.0
      %421 = vst.msk [vmem:[#allocation2 + $0x48] sm:$0x3] %vm412, 0.0
      %422 = vst.msk [vmem:[#allocation2 + $0x50] sm:$0xff] %vm410, 0.0
      %423 = vst.msk [vmem:[#allocation2 + $0x58] sm:$0x3] %vm412, 0.0
      %424 = vst.msk [vmem:[#allocation2 + $0x60] sm:$0xff] %vm410, 0.0
      %425 = vst.msk [vmem:[#allocation2 + $0x68] sm:$0x3] %vm412, 0.0
      %426 = vst.msk [vmem:[#allocation2 + $0x70] sm:$0xff] %vm410, 0.0
      %427 = vst.msk [vmem:[#allocation2 + $0x78] sm:$0x3] %vm412, 0.0
      %428 = vst.msk [vmem:[#allocation2 + $0x80] sm:$0xff] %vm410, 0.0
      %429 = vst.msk [vmem:[#allocation2 + $0x88] sm:$0x3] %vm412, 0.0
      %430 = vst.msk [vmem:[#allocation2 + $0x90] sm:$0xff] %vm410, 0.0
      %431 = vst.msk [vmem:[#allocation2 + $0x98] sm:$0x3] %vm412, 0.0
      %v432 = vld [vmem:[%s365] sm:$0xf]
      %v433 = vld [vmem:[%s365 + $0x4] sm:$0xf]
      %v434 = vld [vmem:[%s365 + $0x8] sm:$0xf]
      %v435 = vld [vmem:[%s365 + $0xc] sm:$0xf]
      %v436 = vld [vmem:[%s365 + $0x10] sm:$0xf]
      %v437 = vld [vmem:[%s365 + $0x14] sm:$0xf]
      %v438 = vld [vmem:[%s365 + $0x18] sm:$0xf]
      %v439 = vld [vmem:[%s365 + $0x1c] sm:$0xf]
      %v440 = vunpack.c.l.bf16 %v432
      %v441 = vunpack.c.l.bf16 %v433
      %v442 = vunpack.c.l.bf16 %v434
      %v443 = vunpack.c.l.bf16 %v435
      %v444 = vunpack.c.l.bf16 %v436
      %v445 = vunpack.c.l.bf16 %v437
      %v446 = vunpack.c.l.bf16 %v438
      %v447 = vunpack.c.l.bf16 %v439
      %s448 = scalar_lea.vmem [#allocation2], 16
      %449 = vst.msk [vmem:[%s448 + $0x1] sm:$0xff] %vm410, %v440
      %450 = vst.msk [vmem:[%s448 + $0x11] sm:$0xff] %vm410, %v441
      %451 = vst.msk [vmem:[%s448 + $0x21] sm:$0xff] %vm410, %v442
      %452 = vst.msk [vmem:[%s448 + $0x31] sm:$0xff] %vm410, %v443
      %453 = vst.msk [vmem:[%s448 + $0x41] sm:$0xff] %vm410, %v444
      %454 = vst.msk [vmem:[%s448 + $0x51] sm:$0xff] %vm410, %v445
      %455 = vst.msk [vmem:[%s448 + $0x61] sm:$0xff] %vm410, %v446
      %456 = vst.msk [vmem:[%s448 + $0x71] sm:$0xff] %vm410, %v447
      %v457 = vld [vmem:[%s378] sm:$0xf]
      %v458 = vunpack.c.l.bf16 %v457
      %v459 = vld [vmem:[%s394] sm:$0xf]
      %v460 = vunpack.c.l.bf16 %v459
      %p461 = scmp.gt.s32.totalorder %s22, 0
      %s462 = scalar_select %p461, 1, 0
      %v463 = vstv %s462
      %vm464 = vcmp.eq.s32.totalorder %v463, 1
      %v465 = vsel %vm464, %v458, 0.0
      %466 = vst.msk [vmem:[#allocation2 + $0x1] sm:$0xff] %vm410, %v465
      %p467 = scmp.lt.s32.totalorder %s22, 0
      %s468 = scalar_select %p467, 1, 0
      %v469 = vstv %s468
      %vm470 = vcmp.eq.s32.totalorder %v469, 1
      %v471 = vsel %vm470, %v460, 0.0
      %s472 = scalar_lea.vmem [#allocation2], 144
      %473 = vst.msk [vmem:[%s472 + $0x1] sm:$0xff] %vm410, %v471
      %v474 = vld [vmem:[#allocation2] sm:$0xff]
      %v475 = vld [vmem:[#allocation2 + $0x10] sm:$0xff]
      %v476 = vld [vmem:[#allocation2 + $0x20] sm:$0xff]
      %v477 = vld [vmem:[#allocation2 + $0x30] sm:$0xff]
      %v478 = vld [vmem:[#allocation2 + $0x40] sm:$0xff]
      %v479 = vld [vmem:[#allocation2 + $0x50] sm:$0xff]
      %v480 = vld [vmem:[#allocation2 + $0x60] sm:$0xff]
      %v481 = vld [vmem:[#allocation2 + $0x70] sm:$0xff]
      %v482 = vld [vmem:[#allocation2 + $0x80] sm:$0xff]
      %v483 = vld [vmem:[#allocation2 + $0x90] sm:$0xff]
      %v484 = vpack.c.bf16 %v474, %v474
      %v485 = vpack.c.bf16 %v475, %v475
      %v486 = vpack.c.bf16 %v476, %v476
      %v487 = vpack.c.bf16 %v477, %v477
      %v488 = vpack.c.bf16 %v478, %v478
      %v489 = vpack.c.bf16 %v479, %v479
      %v490 = vpack.c.bf16 %v480, %v480
      %v491 = vpack.c.bf16 %v481, %v481
      %v492 = vpack.c.bf16 %v482, %v482
      %v493 = vpack.c.bf16 %v483, %v483
      %v494 = vld [vmem:[%s3] sm:$0xf]
      %v495 = vld [vmem:[%s3 + $0x4] sm:$0xf]
      %s496 = scalar_lea.vmem %s3, 24
      %v497 = vld [vmem:[%s496] sm:$0xf]
      %v498 = vld [vmem:[%s496 + $0x4] sm:$0xf]
      %v507 = vunpack.c.l.b16 %v485
      %v508 = vunpack.c.l.b16 %v486
      %v509 = vunpack.c.l.b16 %v487
      %v510 = vunpack.c.l.b16 %v488
      %v511 = vunpack.c.l.b16 %v489
      %v512 = vunpack.c.l.b16 %v490
      %v513 = vunpack.c.l.b16 %v491
      %v514 = vunpack.c.l.b16 %v492
      %v515 = vpack.c.b16 %v508, %v507
      %v516 = vpack.c.b16 %v510, %v509
      %v517 = vpack.c.b16 %v512, %v511
      %v518 = vpack.c.b16 %v514, %v513
      %v521 = vunpack.c.l.b16 %v497
      %v522 = vunpack.c.l.b16 %v498
      %v523 = vpack.c.b16 %v522, %v521
      %v526 = vsel %vm410, %v515, 0
      %v529 = vsel %vm410, %v516, 0
      %v532 = vsel %vm410, %v517, 0
      %v535 = vsel %vm410, %v518, 0
      %537 = vmatprep.subr.bf16.mxu0 0
      %538 = vmatpush1.bf16.msra.mxu0 0
      %539 = vmatprep.subr.bf16.mxu0 0
      %540 = vmatpush1.bf16.msra.mxu0 0
      %541 = vmatprep.subr.bf16.mxu0 0
      %542 = vmatpush1.bf16.msra.mxu0 0
      %543 = vmatprep.subr.bf16.mxu0 0
      %544 = vmatpush1.bf16.msra.mxu0 0
      %545 = vmatprep.subr.bf16.mxu0 0
      %546 = vmatpush1.bf16.msra.mxu0 0
      %547 = vmatprep.subr.bf16.mxu0 0
      %548 = vmatpush1.bf16.msra.mxu0 0
      %549 = vmatprep.subr.bf16.mxu0 0
      %550 = vmatpush1.bf16.msra.mxu0 0
      %551 = vmatprep.subr.bf16.mxu0 0
      %552 = vmatpush1.bf16.msra.mxu0 %v523
      %553 = vmatprep.subr.bf16.mxu0 0
      %554 = vmatpush2.bf16.msra.mxu0 0
      %555 = vmatprep.subr.bf16.mxu0 0
      %556 = vmatpush2.bf16.msra.mxu0 0
      %557 = vmatprep.subr.bf16.mxu0 0
      %558 = vmatpush2.bf16.msra.mxu0 0
      %559 = vmatprep.subr.bf16.mxu0 0
      %560 = vmatpush2.bf16.msra.mxu0 0
      %561 = vmatprep.subr.bf16.mxu0 0
      %562 = vmatpush2.bf16.msra.mxu0 0
      %563 = vmatprep.subr.bf16.mxu0 0
      %564 = vmatpush2.bf16.msra.mxu0 0
      %565 = vmatprep.subr.bf16.mxu0 0
      %566 = vmatpush2.bf16.msra.mxu0 0
      %567 = vmatprep.subr.bf16.mxu0 0
      %568 = vmatpush2.bf16.msra.mxu0 0
      %569 = vmatprep.mubr.bf16.mxu0 0
      %570 = vmatmul.mubr.bf16.gmra.mxu0 %v526
      %v571 = vpop.f32.mrf.mxu0
      %v572 = vadd.f32 0.0, %v571
      %v573 = vpop.f32.mrf.mxu0
      %v574 = vpop.f32.mrf.mxu0
      %v575 = vadd.f32 0.0, %v574
      %v576 = vpop.f32.mrf.mxu0
      %577 = vmatprep.mubr.bf16.mxu0 0
      %578 = vmatmul.mubr.bf16.gmra.mxu0 %v529
      %v579 = vpop.f32.mrf.mxu0
      %v580 = vadd.f32 0.0, %v579
      %v581 = vpop.f32.mrf.mxu0
      %v582 = vpop.f32.mrf.mxu0
      %v583 = vadd.f32 0.0, %v582
      %v584 = vpop.f32.mrf.mxu0
      %585 = vmatprep.mubr.bf16.mxu0 0
      %586 = vmatmul.mubr.bf16.gmra.mxu0 %v532
      %v587 = vpop.f32.mrf.mxu0
      %v588 = vadd.f32 0.0, %v587
      %v589 = vpop.f32.mrf.mxu0
      %v590 = vpop.f32.mrf.mxu0
      %v591 = vadd.f32 0.0, %v590
      %v592 = vpop.f32.mrf.mxu0
      %593 = vmatprep.mubr.bf16.mxu0 0
      %594 = vmatmul.mubr.bf16.gmra.mxu0 %v535
      %v595 = vpop.f32.mrf.mxu0
      %v596 = vadd.f32 0.0, %v595
      %v597 = vpop.f32.mrf.mxu0
      %v598 = vpop.f32.mrf.mxu0
      %v599 = vadd.f32 0.0, %v598
      %v600 = vpop.f32.mrf.mxu0
      %601 = vdwg.mxu0
      %v603 = vunpack.c.l.b16 %v484
      %v604 = vpack.c.b16 %v507, %v603
      %v605 = vpack.c.b16 %v509, %v508
      %v606 = vpack.c.b16 %v511, %v510
      %v607 = vpack.c.b16 %v513, %v512
      %v610 = vunpack.c.l.b16 %v494
      %v611 = vunpack.c.l.b16 %v495
      %v612 = vpack.c.b16 %v611, %v610
      %v615 = vsel %vm410, %v604, 0
      %v618 = vsel %vm410, %v605, 0
      %v621 = vsel %vm410, %v606, 0
      %v624 = vsel %vm410, %v607, 0
      %626 = vmatprep.subr.bf16.mxu0 0
      %627 = vmatpush1.bf16.msra.mxu0 0
      %628 = vmatprep.subr.bf16.mxu0 0
      %629 = vmatpush1.bf16.msra.mxu0 0
      %630 = vmatprep.subr.bf16.mxu0 0
      %631 = vmatpush1.bf16.msra.mxu0 0
      %632 = vmatprep.subr.bf16.mxu0 0
      %633 = vmatpush1.bf16.msra.mxu0 0
      %634 = vmatprep.subr.bf16.mxu0 0
      %635 = vmatpush1.bf16.msra.mxu0 0
      %636 = vmatprep.subr.bf16.mxu0 0
      %637 = vmatpush1.bf16.msra.mxu0 0
      %638 = vmatprep.subr.bf16.mxu0 0
      %639 = vmatpush1.bf16.msra.mxu0 0
      %640 = vmatprep.subr.bf16.mxu0 0
      %641 = vmatpush1.bf16.msra.mxu0 %v612
      %642 = vmatprep.subr.bf16.mxu0 0
      %643 = vmatpush2.bf16.msra.mxu0 0
      %644 = vmatprep.subr.bf16.mxu0 0
      %645 = vmatpush2.bf16.msra.mxu0 0
      %646 = vmatprep.subr.bf16.mxu0 0
      %647 = vmatpush2.bf16.msra.mxu0 0
      %648 = vmatprep.subr.bf16.mxu0 0
      %649 = vmatpush2.bf16.msra.mxu0 0
      %650 = vmatprep.subr.bf16.mxu0 0
      %651 = vmatpush2.bf16.msra.mxu0 0
      %652 = vmatprep.subr.bf16.mxu0 0
      %653 = vmatpush2.bf16.msra.mxu0 0
      %654 = vmatprep.subr.bf16.mxu0 0
      %655 = vmatpush2.bf16.msra.mxu0 0
      %656 = vmatprep.subr.bf16.mxu0 0
      %657 = vmatpush2.bf16.msra.mxu0 0
      %658 = vmatprep.mubr.bf16.mxu0 0
      %659 = vmatmul.mubr.bf16.gmra.mxu0 %v615
      %v660 = vpop.f32.mrf.mxu0
      %v661 = vadd.f32 %v572, %v660
      %v662 = vpop.f32.mrf.mxu0
      %v663 = vpop.f32.mrf.mxu0
      %v664 = vadd.f32 %v575, %v663
      %v665 = vpop.f32.mrf.mxu0
      %666 = vmatprep.mubr.bf16.mxu0 0
      %667 = vmatmul.mubr.bf16.gmra.mxu0 %v618
      %v668 = vpop.f32.mrf.mxu0
      %v669 = vadd.f32 %v580, %v668
      %v670 = vpop.f32.mrf.mxu0
      %v671 = vpop.f32.mrf.mxu0
      %v672 = vadd.f32 %v583, %v671
      %v673 = vpop.f32.mrf.mxu0
      %674 = vmatprep.mubr.bf16.mxu0 0
      %675 = vmatmul.mubr.bf16.gmra.mxu0 %v621
      %v676 = vpop.f32.mrf.mxu0
      %v677 = vadd.f32 %v588, %v676
      %v678 = vpop.f32.mrf.mxu0
      %v679 = vpop.f32.mrf.mxu0
      %v680 = vadd.f32 %v591, %v679
      %v681 = vpop.f32.mrf.mxu0
      %682 = vmatprep.mubr.bf16.mxu0 0
      %683 = vmatmul.mubr.bf16.gmra.mxu0 %v624
      %v684 = vpop.f32.mrf.mxu0
      %v685 = vadd.f32 %v596, %v684
      %v686 = vpop.f32.mrf.mxu0
      %v687 = vpop.f32.mrf.mxu0
      %v688 = vadd.f32 %v599, %v687
      %v689 = vpop.f32.mrf.mxu0
      %690 = vdwg.mxu0
      %s691 = scalar_lea.vmem %s3, 48
      %v692 = vld [vmem:[%s691] sm:$0xf]
      %v693 = vld [vmem:[%s691 + $0x4] sm:$0xf]
      %v695 = vunpack.c.l.b16 %v493
      %v696 = vpack.c.b16 %v695, %v514
      %v699 = vunpack.c.l.b16 %v692
      %v700 = vunpack.c.l.b16 %v693
      %v701 = vpack.c.b16 %v700, %v699
      %v704 = vsel %vm410, %v696, 0
      %706 = vmatprep.subr.bf16.mxu0 0
      %707 = vmatpush1.bf16.msra.mxu0 0
      %708 = vmatprep.subr.bf16.mxu0 0
      %709 = vmatpush1.bf16.msra.mxu0 0
      %710 = vmatprep.subr.bf16.mxu0 0
      %711 = vmatpush1.bf16.msra.mxu0 0
      %712 = vmatprep.subr.bf16.mxu0 0
      %713 = vmatpush1.bf16.msra.mxu0 0
      %714 = vmatprep.subr.bf16.mxu0 0
      %715 = vmatpush1.bf16.msra.mxu0 0
      %716 = vmatprep.subr.bf16.mxu0 0
      %717 = vmatpush1.bf16.msra.mxu0 0
      %718 = vmatprep.subr.bf16.mxu0 0
      %719 = vmatpush1.bf16.msra.mxu0 0
      %720 = vmatprep.subr.bf16.mxu0 0
      %721 = vmatpush1.bf16.msra.mxu0 %v701
      %722 = vmatprep.subr.bf16.mxu0 0
      %723 = vmatpush2.bf16.msra.mxu0 0
      %724 = vmatprep.subr.bf16.mxu0 0
      %725 = vmatpush2.bf16.msra.mxu0 0
      %726 = vmatprep.subr.bf16.mxu0 0
      %727 = vmatpush2.bf16.msra.mxu0 0
      %728 = vmatprep.subr.bf16.mxu0 0
      %729 = vmatpush2.bf16.msra.mxu0 0
      %730 = vmatprep.subr.bf16.mxu0 0
      %731 = vmatpush2.bf16.msra.mxu0 0
      %732 = vmatprep.subr.bf16.mxu0 0
      %733 = vmatpush2.bf16.msra.mxu0 0
      %734 = vmatprep.subr.bf16.mxu0 0
      %735 = vmatpush2.bf16.msra.mxu0 0
      %736 = vmatprep.subr.bf16.mxu0 0
      %737 = vmatpush2.bf16.msra.mxu0 0
      %738 = vmatprep.mubr.bf16.mxu0 0
      %739 = vmatmul.mubr.bf16.gmra.mxu0 %v618
      %v740 = vpop.f32.mrf.mxu0
      %v741 = vadd.f32 0.0, %v740
      %v742 = vpop.f32.mrf.mxu0
      %v743 = vpop.f32.mrf.mxu0
      %v744 = vadd.f32 0.0, %v743
      %v745 = vpop.f32.mrf.mxu0
      %746 = vmatprep.mubr.bf16.mxu0 0
      %747 = vmatmul.mubr.bf16.gmra.mxu0 %v621
      %v748 = vpop.f32.mrf.mxu0
      %v749 = vadd.f32 0.0, %v748
      %v750 = vpop.f32.mrf.mxu0
      %v751 = vpop.f32.mrf.mxu0
      %v752 = vadd.f32 0.0, %v751
      %v753 = vpop.f32.mrf.mxu0
      %754 = vmatprep.mubr.bf16.mxu0 0
      %755 = vmatmul.mubr.bf16.gmra.mxu0 %v624
      %v756 = vpop.f32.mrf.mxu0
      %v757 = vadd.f32 0.0, %v756
      %v758 = vpop.f32.mrf.mxu0
      %v759 = vpop.f32.mrf.mxu0
      %v760 = vadd.f32 0.0, %v759
      %v761 = vpop.f32.mrf.mxu0
      %762 = vmatprep.mubr.bf16.mxu0 0
      %763 = vmatmul.mubr.bf16.gmra.mxu0 %v704
      %v764 = vpop.f32.mrf.mxu0
      %v765 = vadd.f32 0.0, %v764
      %v766 = vpop.f32.mrf.mxu0
      %v767 = vpop.f32.mrf.mxu0
      %v768 = vadd.f32 0.0, %v767
      %v769 = vpop.f32.mrf.mxu0
      %770 = vdwg.mxu0
      %v771 = vadd.f32 %v661, %v741
      %v772 = vadd.f32 %v664, %v744
      %v773 = vadd.f32 %v669, %v749
      %v774 = vadd.f32 %v672, %v752
      %v775 = vadd.f32 %v677, %v757
      %v776 = vadd.f32 %v680, %v760
      %v777 = vadd.f32 %v685, %v765
      %v778 = vadd.f32 %v688, %v768
      %v779 = vld [vmem:[#allocation2 + $0x1] sm:$0xff]
      %v780 = vld [vmem:[#allocation2 + $0x11] sm:$0xff]
      %v781 = vld [vmem:[#allocation2 + $0x21] sm:$0xff]
      %v782 = vld [vmem:[#allocation2 + $0x31] sm:$0xff]
      %v783 = vld [vmem:[#allocation2 + $0x41] sm:$0xff]
      %v784 = vld [vmem:[#allocation2 + $0x51] sm:$0xff]
      %v785 = vld [vmem:[#allocation2 + $0x61] sm:$0xff]
      %v786 = vld [vmem:[#allocation2 + $0x71] sm:$0xff]
      %v787 = vld [vmem:[#allocation2 + $0x81] sm:$0xff]
      %v788 = vld [vmem:[#allocation2 + $0x91] sm:$0xff]
      %v789 = vpack.c.bf16 %v779, %v779
      %v790 = vpack.c.bf16 %v780, %v780
      %v791 = vpack.c.bf16 %v781, %v781
      %v792 = vpack.c.bf16 %v782, %v782
      %v793 = vpack.c.bf16 %v783, %v783
      %v794 = vpack.c.bf16 %v784, %v784
      %v795 = vpack.c.bf16 %v785, %v785
      %v796 = vpack.c.bf16 %v786, %v786
      %v797 = vpack.c.bf16 %v787, %v787
      %v798 = vpack.c.bf16 %v788, %v788
      %s799 = scalar_lea.vmem %s3, 8
      %v800 = vld [vmem:[%s799] sm:$0xf]
      %v801 = vld [vmem:[%s799 + $0x4] sm:$0xf]
      %v810 = vunpack.c.l.b16 %v789
      %v811 = vunpack.c.l.b16 %v790
      %v812 = vunpack.c.l.b16 %v791
      %v813 = vunpack.c.l.b16 %v792
      %v814 = vunpack.c.l.b16 %v793
      %v815 = vunpack.c.l.b16 %v794
      %v816 = vunpack.c.l.b16 %v795
      %v817 = vunpack.c.l.b16 %v796
      %v818 = vpack.c.b16 %v811, %v810
      %v819 = vpack.c.b16 %v813, %v812
      %v820 = vpack.c.b16 %v815, %v814
      %v821 = vpack.c.b16 %v817, %v816
      %v824 = vunpack.c.l.b16 %v800
      %v825 = vunpack.c.l.b16 %v801
      %v826 = vpack.c.b16 %v825, %v824
      %v829 = vsel %vm410, %v818, 0
      %v832 = vsel %vm410, %v819, 0
      %v835 = vsel %vm410, %v820, 0
      %v838 = vsel %vm410, %v821, 0
      %840 = vmatprep.subr.bf16.mxu0 0
      %841 = vmatpush1.bf16.msra.mxu0 0
      %842 = vmatprep.subr.bf16.mxu0 0
      %843 = vmatpush1.bf16.msra.mxu0 0
      %844 = vmatprep.subr.bf16.mxu0 0
      %845 = vmatpush1.bf16.msra.mxu0 0
      %846 = vmatprep.subr.bf16.mxu0 0
      %847 = vmatpush1.bf16.msra.mxu0 0
      %848 = vmatprep.subr.bf16.mxu0 0
      %849 = vmatpush1.bf16.msra.mxu0 0
      %850 = vmatprep.subr.bf16.mxu0 0
      %851 = vmatpush1.bf16.msra.mxu0 0
      %852 = vmatprep.subr.bf16.mxu0 0
      %853 = vmatpush1.bf16.msra.mxu0 0
      %854 = vmatprep.subr.bf16.mxu0 0
      %855 = vmatpush1.bf16.msra.mxu0 %v826
      %856 = vmatprep.subr.bf16.mxu0 0
      %857 = vmatpush2.bf16.msra.mxu0 0
      %858 = vmatprep.subr.bf16.mxu0 0
      %859 = vmatpush2.bf16.msra.mxu0 0
      %860 = vmatprep.subr.bf16.mxu0 0
      %861 = vmatpush2.bf16.msra.mxu0 0
      %862 = vmatprep.subr.bf16.mxu0 0
      %863 = vmatpush2.bf16.msra.mxu0 0
      %864 = vmatprep.subr.bf16.mxu0 0
      %865 = vmatpush2.bf16.msra.mxu0 0
      %866 = vmatprep.subr.bf16.mxu0 0
      %867 = vmatpush2.bf16.msra.mxu0 0
      %868 = vmatprep.subr.bf16.mxu0 0
      %869 = vmatpush2.bf16.msra.mxu0 0
      %870 = vmatprep.subr.bf16.mxu0 0
      %871 = vmatpush2.bf16.msra.mxu0 0
      %872 = vmatprep.mubr.bf16.mxu0 0
      %873 = vmatmul.mubr.bf16.gmra.mxu0 %v829
      %v874 = vpop.f32.mrf.mxu0
      %v875 = vadd.f32 0.0, %v874
      %v876 = vpop.f32.mrf.mxu0
      %v877 = vpop.f32.mrf.mxu0
      %v878 = vadd.f32 0.0, %v877
      %v879 = vpop.f32.mrf.mxu0
      %880 = vmatprep.mubr.bf16.mxu0 0
      %881 = vmatmul.mubr.bf16.gmra.mxu0 %v832
      %v882 = vpop.f32.mrf.mxu0
      %v883 = vadd.f32 0.0, %v882
      %v884 = vpop.f32.mrf.mxu0
      %v885 = vpop.f32.mrf.mxu0
      %v886 = vadd.f32 0.0, %v885
      %v887 = vpop.f32.mrf.mxu0
      %888 = vmatprep.mubr.bf16.mxu0 0
      %889 = vmatmul.mubr.bf16.gmra.mxu0 %v835
      %v890 = vpop.f32.mrf.mxu0
      %v891 = vadd.f32 0.0, %v890
      %v892 = vpop.f32.mrf.mxu0
      %v893 = vpop.f32.mrf.mxu0
      %v894 = vadd.f32 0.0, %v893
      %v895 = vpop.f32.mrf.mxu0
      %896 = vmatprep.mubr.bf16.mxu0 0
      %897 = vmatmul.mubr.bf16.gmra.mxu0 %v838
      %v898 = vpop.f32.mrf.mxu0
      %v899 = vadd.f32 0.0, %v898
      %v900 = vpop.f32.mrf.mxu0
      %v901 = vpop.f32.mrf.mxu0
      %v902 = vadd.f32 0.0, %v901
      %v903 = vpop.f32.mrf.mxu0
      %904 = vdwg.mxu0
      %v905 = vadd.f32 %v771, %v875
      %v906 = vadd.f32 %v772, %v878
      %v907 = vadd.f32 %v773, %v883
      %v908 = vadd.f32 %v774, %v886
      %v909 = vadd.f32 %v775, %v891
      %v910 = vadd.f32 %v776, %v894
      %v911 = vadd.f32 %v777, %v899
      %v912 = vadd.f32 %v778, %v902
      %s913 = scalar_lea.vmem %s3, 32
      %v914 = vld [vmem:[%s913] sm:$0xf]
      %v915 = vld [vmem:[%s913 + $0x4] sm:$0xf]
      %v917 = vunpack.c.l.b16 %v797
      %v918 = vpack.c.b16 %v812, %v811
      %v919 = vpack.c.b16 %v814, %v813
      %v920 = vpack.c.b16 %v816, %v815
      %v921 = vpack.c.b16 %v917, %v817
      %v924 = vunpack.c.l.b16 %v914
      %v925 = vunpack.c.l.b16 %v915
      %v926 = vpack.c.b16 %v925, %v924
      %v929 = vsel %vm410, %v918, 0
      %v932 = vsel %vm410, %v919, 0
      %v935 = vsel %vm410, %v920, 0
      %v938 = vsel %vm410, %v921, 0
      %940 = vmatprep.subr.bf16.mxu0 0
      %941 = vmatpush1.bf16.msra.mxu0 0
      %942 = vmatprep.subr.bf16.mxu0 0
      %943 = vmatpush1.bf16.msra.mxu0 0
      %944 = vmatprep.subr.bf16.mxu0 0
      %945 = vmatpush1.bf16.msra.mxu0 0
      %946 = vmatprep.subr.bf16.mxu0 0
      %947 = vmatpush1.bf16.msra.mxu0 0
      %948 = vmatprep.subr.bf16.mxu0 0
      %949 = vmatpush1.bf16.msra.mxu0 0
      %950 = vmatprep.subr.bf16.mxu0 0
      %951 = vmatpush1.bf16.msra.mxu0 0
      %952 = vmatprep.subr.bf16.mxu0 0
      %953 = vmatpush1.bf16.msra.mxu0 0
      %954 = vmatprep.subr.bf16.mxu0 0
      %955 = vmatpush1.bf16.msra.mxu0 %v926
      %956 = vmatprep.subr.bf16.mxu0 0
      %957 = vmatpush2.bf16.msra.mxu0 0
      %958 = vmatprep.subr.bf16.mxu0 0
      %959 = vmatpush2.bf16.msra.mxu0 0
      %960 = vmatprep.subr.bf16.mxu0 0
      %961 = vmatpush2.bf16.msra.mxu0 0
      %962 = vmatprep.subr.bf16.mxu0 0
      %963 = vmatpush2.bf16.msra.mxu0 0
      %964 = vmatprep.subr.bf16.mxu0 0
      %965 = vmatpush2.bf16.msra.mxu0 0
      %966 = vmatprep.subr.bf16.mxu0 0
      %967 = vmatpush2.bf16.msra.mxu0 0
      %968 = vmatprep.subr.bf16.mxu0 0
      %969 = vmatpush2.bf16.msra.mxu0 0
      %970 = vmatprep.subr.bf16.mxu0 0
      %971 = vmatpush2.bf16.msra.mxu0 0
      %972 = vmatprep.mubr.bf16.mxu0 0
      %973 = vmatmul.mubr.bf16.gmra.mxu0 %v929
      %v974 = vpop.f32.mrf.mxu0
      %v975 = vadd.f32 0.0, %v974
      %v976 = vpop.f32.mrf.mxu0
      %v977 = vpop.f32.mrf.mxu0
      %v978 = vadd.f32 0.0, %v977
      %v979 = vpop.f32.mrf.mxu0
      %980 = vmatprep.mubr.bf16.mxu0 0
      %981 = vmatmul.mubr.bf16.gmra.mxu0 %v932
      %v982 = vpop.f32.mrf.mxu0
      %v983 = vadd.f32 0.0, %v982
      %v984 = vpop.f32.mrf.mxu0
      %v985 = vpop.f32.mrf.mxu0
      %v986 = vadd.f32 0.0, %v985
      %v987 = vpop.f32.mrf.mxu0
      %988 = vmatprep.mubr.bf16.mxu0 0
      %989 = vmatmul.mubr.bf16.gmra.mxu0 %v935
      %v990 = vpop.f32.mrf.mxu0
      %v991 = vadd.f32 0.0, %v990
      %v992 = vpop.f32.mrf.mxu0
      %v993 = vpop.f32.mrf.mxu0
      %v994 = vadd.f32 0.0, %v993
      %v995 = vpop.f32.mrf.mxu0
      %996 = vmatprep.mubr.bf16.mxu0 0
      %997 = vmatmul.mubr.bf16.gmra.mxu0 %v938
      %v998 = vpop.f32.mrf.mxu0
      %v999 = vadd.f32 0.0, %v998
      %v1000 = vpop.f32.mrf.mxu0
      %v1001 = vpop.f32.mrf.mxu0
      %v1002 = vadd.f32 0.0, %v1001
      %v1003 = vpop.f32.mrf.mxu0
      %1004 = vdwg.mxu0
      %v1005 = vadd.f32 %v905, %v975
      %v1006 = vadd.f32 %v906, %v978
      %v1007 = vadd.f32 %v907, %v983
      %v1008 = vadd.f32 %v908, %v986
      %v1009 = vadd.f32 %v909, %v991
      %v1010 = vadd.f32 %v910, %v994
      %v1011 = vadd.f32 %v911, %v999
      %v1012 = vadd.f32 %v912, %v1002
      %s1013 = scalar_lea.vmem %s3, 56
      %v1014 = vld [vmem:[%s1013] sm:$0xf]
      %v1015 = vld [vmem:[%s1013 + $0x4] sm:$0xf]
      %v1017 = vunpack.c.l.b16 %v798
      %v1018 = vpack.c.b16 %v1017, %v917
      %v1021 = vunpack.c.l.b16 %v1014
      %v1022 = vunpack.c.l.b16 %v1015
      %v1023 = vpack.c.b16 %v1022, %v1021
      %v1026 = vsel %vm410, %v1018, 0
      %1028 = vmatprep.subr.bf16.mxu0 0
      %1029 = vmatpush1.bf16.msra.mxu0 0
      %1030 = vmatprep.subr.bf16.mxu0 0
      %1031 = vmatpush1.bf16.msra.mxu0 0
      %1032 = vmatprep.subr.bf16.mxu0 0
      %1033 = vmatpush1.bf16.msra.mxu0 0
      %1034 = vmatprep.subr.bf16.mxu0 0
      %1035 = vmatpush1.bf16.msra.mxu0 0
      %1036 = vmatprep.subr.bf16.mxu0 0
      %1037 = vmatpush1.bf16.msra.mxu0 0
      %1038 = vmatprep.subr.bf16.mxu0 0
      %1039 = vmatpush1.bf16.msra.mxu0 0
      %1040 = vmatprep.subr.bf16.mxu0 0
      %1041 = vmatpush1.bf16.msra.mxu0 0
      %1042 = vmatprep.subr.bf16.mxu0 0
      %1043 = vmatpush1.bf16.msra.mxu0 %v1023
      %1044 = vmatprep.subr.bf16.mxu0 0
      %1045 = vmatpush2.bf16.msra.mxu0 0
      %1046 = vmatprep.subr.bf16.mxu0 0
      %1047 = vmatpush2.bf16.msra.mxu0 0
      %1048 = vmatprep.subr.bf16.mxu0 0
      %1049 = vmatpush2.bf16.msra.mxu0 0
      %1050 = vmatprep.subr.bf16.mxu0 0
      %1051 = vmatpush2.bf16.msra.mxu0 0
      %1052 = vmatprep.subr.bf16.mxu0 0
      %1053 = vmatpush2.bf16.msra.mxu0 0
      %1054 = vmatprep.subr.bf16.mxu0 0
      %1055 = vmatpush2.bf16.msra.mxu0 0
      %1056 = vmatprep.subr.bf16.mxu0 0
      %1057 = vmatpush2.bf16.msra.mxu0 0
      %1058 = vmatprep.subr.bf16.mxu0 0
      %1059 = vmatpush2.bf16.msra.mxu0 0
      %1060 = vmatprep.mubr.bf16.mxu0 0
      %1061 = vmatmul.mubr.bf16.gmra.mxu0 %v832
      %v1062 = vpop.f32.mrf.mxu0
      %v1063 = vadd.f32 0.0, %v1062
      %v1064 = vpop.f32.mrf.mxu0
      %v1065 = vpop.f32.mrf.mxu0
      %v1066 = vadd.f32 0.0, %v1065
      %v1067 = vpop.f32.mrf.mxu0
      %1068 = vmatprep.mubr.bf16.mxu0 0
      %1069 = vmatmul.mubr.bf16.gmra.mxu0 %v835
      %v1070 = vpop.f32.mrf.mxu0
      %v1071 = vadd.f32 0.0, %v1070
      %v1072 = vpop.f32.mrf.mxu0
      %v1073 = vpop.f32.mrf.mxu0
      %v1074 = vadd.f32 0.0, %v1073
      %v1075 = vpop.f32.mrf.mxu0
      %1076 = vmatprep.mubr.bf16.mxu0 0
      %1077 = vmatmul.mubr.bf16.gmra.mxu0 %v838
      %v1078 = vpop.f32.mrf.mxu0
      %v1079 = vadd.f32 0.0, %v1078
      %v1080 = vpop.f32.mrf.mxu0
      %v1081 = vpop.f32.mrf.mxu0
      %v1082 = vadd.f32 0.0, %v1081
      %v1083 = vpop.f32.mrf.mxu0
      %1084 = vmatprep.mubr.bf16.mxu0 0
      %1085 = vmatmul.mubr.bf16.gmra.mxu0 %v1026
      %v1086 = vpop.f32.mrf.mxu0
      %v1087 = vadd.f32 0.0, %v1086
      %v1088 = vpop.f32.mrf.mxu0
      %v1089 = vpop.f32.mrf.mxu0
      %v1090 = vadd.f32 0.0, %v1089
      %v1091 = vpop.f32.mrf.mxu0
      %1092 = vdwg.mxu0
      %v1093 = vadd.f32 %v1005, %v1063
      %v1094 = vadd.f32 %v1006, %v1066
      %v1095 = vadd.f32 %v1007, %v1071
      %v1096 = vadd.f32 %v1008, %v1074
      %v1097 = vadd.f32 %v1009, %v1079
      %v1098 = vadd.f32 %v1010, %v1082
      %v1099 = vadd.f32 %v1011, %v1087
      %v1100 = vadd.f32 %v1012, %v1090
      %v1101 = vld [vmem:[#allocation2 + $0x2] sm:$0xff]
      %v1102 = vld [vmem:[#allocation2 + $0x12] sm:$0xff]
      %v1103 = vld [vmem:[#allocation2 + $0x22] sm:$0xff]
      %v1104 = vld [vmem:[#allocation2 + $0x32] sm:$0xff]
      %v1105 = vld [vmem:[#allocation2 + $0x42] sm:$0xff]
      %v1106 = vld [vmem:[#allocation2 + $0x52] sm:$0xff]
      %v1107 = vld [vmem:[#allocation2 + $0x62] sm:$0xff]
      %v1108 = vld [vmem:[#allocation2 + $0x72] sm:$0xff]
      %v1109 = vld [vmem:[#allocation2 + $0x82] sm:$0xff]
      %v1110 = vld [vmem:[#allocation2 + $0x92] sm:$0xff]
      %v1111 = vpack.c.bf16 %v1101, %v1101
      %v1112 = vpack.c.bf16 %v1102, %v1102
      %v1113 = vpack.c.bf16 %v1103, %v1103
      %v1114 = vpack.c.bf16 %v1104, %v1104
      %v1115 = vpack.c.bf16 %v1105, %v1105
      %v1116 = vpack.c.bf16 %v1106, %v1106
      %v1117 = vpack.c.bf16 %v1107, %v1107
      %v1118 = vpack.c.bf16 %v1108, %v1108
      %v1119 = vpack.c.bf16 %v1109, %v1109
      %v1120 = vpack.c.bf16 %v1110, %v1110
      %s1121 = scalar_lea.vmem %s3, 16
      %v1122 = vld [vmem:[%s1121] sm:$0xf]
      %v1123 = vld [vmem:[%s1121 + $0x4] sm:$0xf]
      %v1132 = vunpack.c.l.b16 %v1111
      %v1133 = vunpack.c.l.b16 %v1112
      %v1134 = vunpack.c.l.b16 %v1113
      %v1135 = vunpack.c.l.b16 %v1114
      %v1136 = vunpack.c.l.b16 %v1115
      %v1137 = vunpack.c.l.b16 %v1116
      %v1138 = vunpack.c.l.b16 %v1117
      %v1139 = vunpack.c.l.b16 %v1118
      %v1140 = vpack.c.b16 %v1133, %v1132
      %v1141 = vpack.c.b16 %v1135, %v1134
      %v1142 = vpack.c.b16 %v1137, %v1136
      %v1143 = vpack.c.b16 %v1139, %v1138
      %v1146 = vunpack.c.l.b16 %v1122
      %v1147 = vunpack.c.l.b16 %v1123
      %v1148 = vpack.c.b16 %v1147, %v1146
      %v1151 = vsel %vm410, %v1140, 0
      %v1154 = vsel %vm410, %v1141, 0
      %v1157 = vsel %vm410, %v1142, 0
      %v1160 = vsel %vm410, %v1143, 0
      %1162 = vmatprep.subr.bf16.mxu0 0
      %1163 = vmatpush1.bf16.msra.mxu0 0
      %1164 = vmatprep.subr.bf16.mxu0 0
      %1165 = vmatpush1.bf16.msra.mxu0 0
      %1166 = vmatprep.subr.bf16.mxu0 0
      %1167 = vmatpush1.bf16.msra.mxu0 0
      %1168 = vmatprep.subr.bf16.mxu0 0
      %1169 = vmatpush1.bf16.msra.mxu0 0
      %1170 = vmatprep.subr.bf16.mxu0 0
      %1171 = vmatpush1.bf16.msra.mxu0 0
      %1172 = vmatprep.subr.bf16.mxu0 0
      %1173 = vmatpush1.bf16.msra.mxu0 0
      %1174 = vmatprep.subr.bf16.mxu0 0
      %1175 = vmatpush1.bf16.msra.mxu0 0
      %1176 = vmatprep.subr.bf16.mxu0 0
      %1177 = vmatpush1.bf16.msra.mxu0 %v1148
      %1178 = vmatprep.subr.bf16.mxu0 0
      %1179 = vmatpush2.bf16.msra.mxu0 0
      %1180 = vmatprep.subr.bf16.mxu0 0
      %1181 = vmatpush2.bf16.msra.mxu0 0
      %1182 = vmatprep.subr.bf16.mxu0 0
      %1183 = vmatpush2.bf16.msra.mxu0 0
      %1184 = vmatprep.subr.bf16.mxu0 0
      %1185 = vmatpush2.bf16.msra.mxu0 0
      %1186 = vmatprep.subr.bf16.mxu0 0
      %1187 = vmatpush2.bf16.msra.mxu0 0
      %1188 = vmatprep.subr.bf16.mxu0 0
      %1189 = vmatpush2.bf16.msra.mxu0 0
      %1190 = vmatprep.subr.bf16.mxu0 0
      %1191 = vmatpush2.bf16.msra.mxu0 0
      %1192 = vmatprep.subr.bf16.mxu0 0
      %1193 = vmatpush2.bf16.msra.mxu0 0
      %1194 = vmatprep.mubr.bf16.mxu0 0
      %1195 = vmatmul.mubr.bf16.gmra.mxu0 %v1151
      %v1196 = vpop.f32.mrf.mxu0
      %v1197 = vadd.f32 0.0, %v1196
      %v1198 = vpop.f32.mrf.mxu0
      %v1199 = vpop.f32.mrf.mxu0
      %v1200 = vadd.f32 0.0, %v1199
      %v1201 = vpop.f32.mrf.mxu0
      %1202 = vmatprep.mubr.bf16.mxu0 0
      %1203 = vmatmul.mubr.bf16.gmra.mxu0 %v1154
      %v1204 = vpop.f32.mrf.mxu0
      %v1205 = vadd.f32 0.0, %v1204
      %v1206 = vpop.f32.mrf.mxu0
      %v1207 = vpop.f32.mrf.mxu0
      %v1208 = vadd.f32 0.0, %v1207
      %v1209 = vpop.f32.mrf.mxu0
      %1210 = vmatprep.mubr.bf16.mxu0 0
      %1211 = vmatmul.mubr.bf16.gmra.mxu0 %v1157
      %v1212 = vpop.f32.mrf.mxu0
      %v1213 = vadd.f32 0.0, %v1212
      %v1214 = vpop.f32.mrf.mxu0
      %v1215 = vpop.f32.mrf.mxu0
      %v1216 = vadd.f32 0.0, %v1215
      %v1217 = vpop.f32.mrf.mxu0
      %1218 = vmatprep.mubr.bf16.mxu0 0
      %1219 = vmatmul.mubr.bf16.gmra.mxu0 %v1160
      %v1220 = vpop.f32.mrf.mxu0
      %v1221 = vadd.f32 0.0, %v1220
      %v1222 = vpop.f32.mrf.mxu0
      %v1223 = vpop.f32.mrf.mxu0
      %v1224 = vadd.f32 0.0, %v1223
      %v1225 = vpop.f32.mrf.mxu0
      %1226 = vdwg.mxu0
      %v1227 = vadd.f32 %v1093, %v1197
      %v1228 = vadd.f32 %v1094, %v1200
      %v1229 = vadd.f32 %v1095, %v1205
      %v1230 = vadd.f32 %v1096, %v1208
      %v1231 = vadd.f32 %v1097, %v1213
      %v1232 = vadd.f32 %v1098, %v1216
      %v1233 = vadd.f32 %v1099, %v1221
      %v1234 = vadd.f32 %v1100, %v1224
      %s1235 = scalar_lea.vmem %s3, 40
      %v1236 = vld [vmem:[%s1235] sm:$0xf]
      %v1237 = vld [vmem:[%s1235 + $0x4] sm:$0xf]
      %v1239 = vunpack.c.l.b16 %v1119
      %v1240 = vpack.c.b16 %v1134, %v1133
      %v1241 = vpack.c.b16 %v1136, %v1135
      %v1242 = vpack.c.b16 %v1138, %v1137
      %v1243 = vpack.c.b16 %v1239, %v1139
      %v1246 = vunpack.c.l.b16 %v1236
      %v1247 = vunpack.c.l.b16 %v1237
      %v1248 = vpack.c.b16 %v1247, %v1246
      %v1251 = vsel %vm410, %v1240, 0
      %v1254 = vsel %vm410, %v1241, 0
      %v1257 = vsel %vm410, %v1242, 0
      %v1260 = vsel %vm410, %v1243, 0
      %1262 = vmatprep.subr.bf16.mxu0 0
      %1263 = vmatpush1.bf16.msra.mxu0 0
      %1264 = vmatprep.subr.bf16.mxu0 0
      %1265 = vmatpush1.bf16.msra.mxu0 0
      %1266 = vmatprep.subr.bf16.mxu0 0
      %1267 = vmatpush1.bf16.msra.mxu0 0
      %1268 = vmatprep.subr.bf16.mxu0 0
      %1269 = vmatpush1.bf16.msra.mxu0 0
      %1270 = vmatprep.subr.bf16.mxu0 0
      %1271 = vmatpush1.bf16.msra.mxu0 0
      %1272 = vmatprep.subr.bf16.mxu0 0
      %1273 = vmatpush1.bf16.msra.mxu0 0
      %1274 = vmatprep.subr.bf16.mxu0 0
      %1275 = vmatpush1.bf16.msra.mxu0 0
      %1276 = vmatprep.subr.bf16.mxu0 0
      %1277 = vmatpush1.bf16.msra.mxu0 %v1248
      %1278 = vmatprep.subr.bf16.mxu0 0
      %1279 = vmatpush2.bf16.msra.mxu0 0
      %1280 = vmatprep.subr.bf16.mxu0 0
      %1281 = vmatpush2.bf16.msra.mxu0 0
      %1282 = vmatprep.subr.bf16.mxu0 0
      %1283 = vmatpush2.bf16.msra.mxu0 0
      %1284 = vmatprep.subr.bf16.mxu0 0
      %1285 = vmatpush2.bf16.msra.mxu0 0
      %1286 = vmatprep.subr.bf16.mxu0 0
      %1287 = vmatpush2.bf16.msra.mxu0 0
      %1288 = vmatprep.subr.bf16.mxu0 0
      %1289 = vmatpush2.bf16.msra.mxu0 0
      %1290 = vmatprep.subr.bf16.mxu0 0
      %1291 = vmatpush2.bf16.msra.mxu0 0
      %1292 = vmatprep.subr.bf16.mxu0 0
      %1293 = vmatpush2.bf16.msra.mxu0 0
      %1294 = vmatprep.mubr.bf16.mxu0 0
      %1295 = vmatmul.mubr.bf16.gmra.mxu0 %v1251
      %v1296 = vpop.f32.mrf.mxu0
      %v1297 = vadd.f32 0.0, %v1296
      %v1298 = vpop.f32.mrf.mxu0
      %v1299 = vpop.f32.mrf.mxu0
      %v1300 = vadd.f32 0.0, %v1299
      %v1301 = vpop.f32.mrf.mxu0
      %1302 = vmatprep.mubr.bf16.mxu0 0
      %1303 = vmatmul.mubr.bf16.gmra.mxu0 %v1254
      %v1304 = vpop.f32.mrf.mxu0
      %v1305 = vadd.f32 0.0, %v1304
      %v1306 = vpop.f32.mrf.mxu0
      %v1307 = vpop.f32.mrf.mxu0
      %v1308 = vadd.f32 0.0, %v1307
      %v1309 = vpop.f32.mrf.mxu0
      %1310 = vmatprep.mubr.bf16.mxu0 0
      %1311 = vmatmul.mubr.bf16.gmra.mxu0 %v1257
      %v1312 = vpop.f32.mrf.mxu0
      %v1313 = vadd.f32 0.0, %v1312
      %v1314 = vpop.f32.mrf.mxu0
      %v1315 = vpop.f32.mrf.mxu0
      %v1316 = vadd.f32 0.0, %v1315
      %v1317 = vpop.f32.mrf.mxu0
      %1318 = vmatprep.mubr.bf16.mxu0 0
      %1319 = vmatmul.mubr.bf16.gmra.mxu0 %v1260
      %v1320 = vpop.f32.mrf.mxu0
      %v1321 = vadd.f32 0.0, %v1320
      %v1322 = vpop.f32.mrf.mxu0
      %v1323 = vpop.f32.mrf.mxu0
      %v1324 = vadd.f32 0.0, %v1323
      %v1325 = vpop.f32.mrf.mxu0
      %1326 = vdwg.mxu0
      %v1327 = vadd.f32 %v1227, %v1297
      %v1328 = vadd.f32 %v1228, %v1300
      %v1329 = vadd.f32 %v1229, %v1305
      %v1330 = vadd.f32 %v1230, %v1308
      %v1331 = vadd.f32 %v1231, %v1313
      %v1332 = vadd.f32 %v1232, %v1316
      %v1333 = vadd.f32 %v1233, %v1321
      %v1334 = vadd.f32 %v1234, %v1324
      %s1335 = scalar_lea.vmem %s3, 64
      %v1336 = vld [vmem:[%s1335] sm:$0xf]
      %v1337 = vld [vmem:[%s1335 + $0x4] sm:$0xf]
      %v1339 = vunpack.c.l.b16 %v1120
      %v1340 = vpack.c.b16 %v1339, %v1239
      %v1343 = vunpack.c.l.b16 %v1336
      %v1344 = vunpack.c.l.b16 %v1337
      %v1345 = vpack.c.b16 %v1344, %v1343
      %v1348 = vsel %vm410, %v1340, 0
      %1350 = vmatprep.subr.bf16.mxu0 0
      %1351 = vmatpush1.bf16.msra.mxu0 0
      %1352 = vmatprep.subr.bf16.mxu0 0
      %1353 = vmatpush1.bf16.msra.mxu0 0
      %1354 = vmatprep.subr.bf16.mxu0 0
      %1355 = vmatpush1.bf16.msra.mxu0 0
      %1356 = vmatprep.subr.bf16.mxu0 0
      %1357 = vmatpush1.bf16.msra.mxu0 0
      %1358 = vmatprep.subr.bf16.mxu0 0
      %1359 = vmatpush1.bf16.msra.mxu0 0
      %1360 = vmatprep.subr.bf16.mxu0 0
      %1361 = vmatpush1.bf16.msra.mxu0 0
      %1362 = vmatprep.subr.bf16.mxu0 0
      %1363 = vmatpush1.bf16.msra.mxu0 0
      %1364 = vmatprep.subr.bf16.mxu0 0
      %1365 = vmatpush1.bf16.msra.mxu0 %v1345
      %1366 = vmatprep.subr.bf16.mxu0 0
      %1367 = vmatpush2.bf16.msra.mxu0 0
      %1368 = vmatprep.subr.bf16.mxu0 0
      %1369 = vmatpush2.bf16.msra.mxu0 0
      %1370 = vmatprep.subr.bf16.mxu0 0
      %1371 = vmatpush2.bf16.msra.mxu0 0
      %1372 = vmatprep.subr.bf16.mxu0 0
      %1373 = vmatpush2.bf16.msra.mxu0 0
      %1374 = vmatprep.subr.bf16.mxu0 0
      %1375 = vmatpush2.bf16.msra.mxu0 0
      %1376 = vmatprep.subr.bf16.mxu0 0
      %1377 = vmatpush2.bf16.msra.mxu0 0
      %1378 = vmatprep.subr.bf16.mxu0 0
      %1379 = vmatpush2.bf16.msra.mxu0 0
      %1380 = vmatprep.subr.bf16.mxu0 0
      %1381 = vmatpush2.bf16.msra.mxu0 0
      %1382 = vmatprep.mubr.bf16.mxu0 0
      %1383 = vmatmul.mubr.bf16.gmra.mxu0 %v1154
      %v1384 = vpop.f32.mrf.mxu0
      %v1385 = vadd.f32 0.0, %v1384
      %v1386 = vpop.f32.mrf.mxu0
      %v1387 = vpop.f32.mrf.mxu0
      %v1388 = vadd.f32 0.0, %v1387
      %v1389 = vpop.f32.mrf.mxu0
      %1390 = vmatprep.mubr.bf16.mxu0 0
      %1391 = vmatmul.mubr.bf16.gmra.mxu0 %v1157
      %v1392 = vpop.f32.mrf.mxu0
      %v1393 = vadd.f32 0.0, %v1392
      %v1394 = vpop.f32.mrf.mxu0
      %v1395 = vpop.f32.mrf.mxu0
      %v1396 = vadd.f32 0.0, %v1395
      %v1397 = vpop.f32.mrf.mxu0
      %1398 = vmatprep.mubr.bf16.mxu0 0
      %1399 = vmatmul.mubr.bf16.gmra.mxu0 %v1160
      %v1400 = vpop.f32.mrf.mxu0
      %v1401 = vadd.f32 0.0, %v1400
      %v1402 = vpop.f32.mrf.mxu0
      %v1403 = vpop.f32.mrf.mxu0
      %v1404 = vadd.f32 0.0, %v1403
      %v1405 = vpop.f32.mrf.mxu0
      %1406 = vmatprep.mubr.bf16.mxu0 0
      %1407 = vmatmul.mubr.bf16.gmra.mxu0 %v1348
      %v1408 = vpop.f32.mrf.mxu0
      %v1409 = vadd.f32 0.0, %v1408
      %v1410 = vpop.f32.mrf.mxu0
      %v1411 = vpop.f32.mrf.mxu0
      %v1412 = vadd.f32 0.0, %v1411
      %v1413 = vpop.f32.mrf.mxu0
      %1414 = vdwg.mxu0
      %v1415 = vadd.f32 %v1327, %v1385
      %v1416 = vadd.f32 %v1328, %v1388
      %v1417 = vadd.f32 %v1329, %v1393
      %v1418 = vadd.f32 %v1330, %v1396
      %v1419 = vadd.f32 %v1331, %v1401
      %v1420 = vadd.f32 %v1332, %v1404
      %v1421 = vadd.f32 %v1333, %v1409
      %v1422 = vadd.f32 %v1334, %v1412
      %v1423 = vld [vmem:[%s4] sm:$0x1]
      %v1425 = vlaneseq
      %v1426 = vshrl.u32 %v1425, 7
      %v1427 = vsub.s32 0, %v1426
      %v1428 = vrot.slane %v1423, %v1427
      %v1430 = vadd.f32 %v1415, %v1428
      %v1431 = vadd.f32 %v1416, %v1428
      %v1432 = vadd.f32 %v1417, %v1428
      %v1433 = vadd.f32 %v1418, %v1428
      %v1434 = vadd.f32 %v1419, %v1428
      %v1435 = vadd.f32 %v1420, %v1428
      %v1436 = vadd.f32 %v1421, %v1428
      %v1437 = vadd.f32 %v1422, %v1428
      %v1438 = vmax.f32 %v1430, 0.0
      %v1439 = vmax.f32 %v1431, 0.0
      %v1440 = vmax.f32 %v1432, 0.0
      %v1441 = vmax.f32 %v1433, 0.0
      %v1442 = vmax.f32 %v1434, 0.0
      %v1443 = vmax.f32 %v1435, 0.0
      %v1444 = vmax.f32 %v1436, 0.0
      %v1445 = vmax.f32 %v1437, 0.0
      %v1446 = vpack.c.bf16 %v1439, %v1438
      %v1447 = vpack.c.bf16 %v1441, %v1440
      %v1448 = vpack.c.bf16 %v1443, %v1442
      %v1449 = vpack.c.bf16 %v1445, %v1444
      %v1450 = vld [vmem:[%s5] sm:$0xf]
      %v1451 = vld [vmem:[%s5 + $0x4] sm:$0xf]
      %v1454 = vunpack.c.l.b16 %v1450
      %v1455 = vunpack.c.l.b16 %v1451
      %v1456 = vpack.c.b16 %v1455, %v1454
      %v1459 = vsel %vm410, %v1446, 0
      %v1462 = vsel %vm410, %v1447, 0
      %v1465 = vsel %vm410, %v1448, 0
      %v1468 = vsel %vm410, %v1449, 0
      %1470 = vmatprep.subr.bf16.mxu0 0
      %1471 = vmatpush1.bf16.msra.mxu0 0
      %1472 = vmatprep.subr.bf16.mxu0 0
      %1473 = vmatpush1.bf16.msra.mxu0 0
      %1474 = vmatprep.subr.bf16.mxu0 0
      %1475 = vmatpush1.bf16.msra.mxu0 0
      %1476 = vmatprep.subr.bf16.mxu0 0
      %1477 = vmatpush1.bf16.msra.mxu0 0
      %1478 = vmatprep.subr.bf16.mxu0 0
      %1479 = vmatpush1.bf16.msra.mxu0 0
      %1480 = vmatprep.subr.bf16.mxu0 0
      %1481 = vmatpush1.bf16.msra.mxu0 0
      %1482 = vmatprep.subr.bf16.mxu0 0
      %1483 = vmatpush1.bf16.msra.mxu0 0
      %1484 = vmatprep.subr.bf16.mxu0 0
      %1485 = vmatpush1.bf16.msra.mxu0 %v1456
      %1486 = vmatprep.subr.bf16.mxu0 0
      %1487 = vmatpush2.bf16.msra.mxu0 0
      %1488 = vmatprep.subr.bf16.mxu0 0
      %1489 = vmatpush2.bf16.msra.mxu0 0
      %1490 = vmatprep.subr.bf16.mxu0 0
      %1491 = vmatpush2.bf16.msra.mxu0 0
      %1492 = vmatprep.subr.bf16.mxu0 0
      %1493 = vmatpush2.bf16.msra.mxu0 0
      %1494 = vmatprep.subr.bf16.mxu0 0
      %1495 = vmatpush2.bf16.msra.mxu0 0
      %1496 = vmatprep.subr.bf16.mxu0 0
      %1497 = vmatpush2.bf16.msra.mxu0 0
      %1498 = vmatprep.subr.bf16.mxu0 0
      %1499 = vmatpush2.bf16.msra.mxu0 0
      %1500 = vmatprep.subr.bf16.mxu0 0
      %1501 = vmatpush2.bf16.msra.mxu0 0
      %1502 = vmatprep.mubr.bf16.mxu0 0
      %1503 = vmatmul.mubr.bf16.gmra.mxu0 %v1459
      %v1504 = vpop.f32.mrf.mxu0
      %v1505 = vadd.f32 0.0, %v1504
      %v1506 = vpop.f32.mrf.mxu0
      %v1507 = vpop.f32.mrf.mxu0
      %v1508 = vadd.f32 0.0, %v1507
      %v1509 = vpop.f32.mrf.mxu0
      %1510 = vmatprep.mubr.bf16.mxu0 0
      %1511 = vmatmul.mubr.bf16.gmra.mxu0 %v1462
      %v1512 = vpop.f32.mrf.mxu0
      %v1513 = vadd.f32 0.0, %v1512
      %v1514 = vpop.f32.mrf.mxu0
      %v1515 = vpop.f32.mrf.mxu0
      %v1516 = vadd.f32 0.0, %v1515
      %v1517 = vpop.f32.mrf.mxu0
      %1518 = vmatprep.mubr.bf16.mxu0 0
      %1519 = vmatmul.mubr.bf16.gmra.mxu0 %v1465
      %v1520 = vpop.f32.mrf.mxu0
      %v1521 = vadd.f32 0.0, %v1520
      %v1522 = vpop.f32.mrf.mxu0
      %v1523 = vpop.f32.mrf.mxu0
      %v1524 = vadd.f32 0.0, %v1523
      %v1525 = vpop.f32.mrf.mxu0
      %1526 = vmatprep.mubr.bf16.mxu0 0
      %1527 = vmatmul.mubr.bf16.gmra.mxu0 %v1468
      %v1528 = vpop.f32.mrf.mxu0
      %v1529 = vadd.f32 0.0, %v1528
      %v1530 = vpop.f32.mrf.mxu0
      %v1531 = vpop.f32.mrf.mxu0
      %v1532 = vadd.f32 0.0, %v1531
      %v1533 = vpop.f32.mrf.mxu0
      %1534 = vdwg.mxu0
      %vm1535 = vcmask 64512
      %1536 = vst.msk [vmem:[%s407] sm:$0xff] %vm1535, %v1505
      %1537 = vst.msk [vmem:[%s407 + $0x8] sm:$0xff] %vm1535, %v1508
      %1538 = vst.msk [vmem:[%s407 + $0x10] sm:$0xff] %vm1535, %v1513
      %1539 = vst.msk [vmem:[%s407 + $0x18] sm:$0xff] %vm1535, %v1516
      %1540 = vst.msk [vmem:[%s407 + $0x20] sm:$0xff] %vm1535, %v1521
      %1541 = vst.msk [vmem:[%s407 + $0x28] sm:$0xff] %vm1535, %v1524
      %1542 = vst.msk [vmem:[%s407 + $0x30] sm:$0xff] %vm1535, %v1529
      %1543 = vst.msk [vmem:[%s407 + $0x38] sm:$0xff] %vm1535, %v1532
      %s1544 = smul.u32 8, %s22
      %p1545 = scmp.lt.s32.totalorder %s21, 1
      %s1546 = scalar_select %p1545, %s21, 1
      %p1547 = scmp.lt.s32.totalorder %s1544, 7
      %s1548 = scalar_select %p1547, %s1544, 7
      %s1549 = smul.addr %s1546, 8
      %s1550 = sadd.s32 %s1548, %s1549
      %s1551 = smul.addr %s1550, 8
      %s1552 = scalar_lea.vmem %s6, %s1551
      // Predicated region
      $region45: #{proj_forward.3} parent=43 // pred_check
        %p1553 = pneg %p212
      $region46: #{proj_forward.3} parent=43 // pred_check_branch
        %1555 = sbr.rel (%p1553) target = $region48
      $region47: #{proj_forward.3} parent=43 // pred_region
        %s1556 = smul.u32 8, %s22
      $region48: #{proj_forward.3} parent=43 // pred_fallthru
        _
    $region44: #{proj_forward.3} parent=5 // pred_fallthru
      _
    %p1557 = scmp.le.s32.totalorder 2, %s12
    // Predicated region
    $region49: #{proj_forward.3} parent=5 // pred_check
      %p1558 = pneg %p1557
    $region50: #{proj_forward.3} parent=5 // pred_check_branch
      %1560 = sbr.rel (%p1558) target = $region52
    $region51: #{proj_forward.3} parent=5 // pred_region
      %s1561 = ssub.s32 %s12, 2
      // Predicated region
      $region53: #{proj_forward.3} parent=51 // pred_check
        %p1562 = pneg %p218
      $region54: #{proj_forward.3} parent=51 // pred_check_branch
        %1564 = sbr.rel (%p1562) target = $region56
      $region55: #{proj_forward.3} parent=51 // pred_region
        %s1565 = smul.u32 8, %s24
        %p1566 = scmp.lt.s32.totalorder %s23, 1
        %s1567 = scalar_select %p1566, %s23, 1
        %p1568 = scmp.lt.s32.totalorder %s1565, 7
        %s1569 = scalar_select %p1568, %s1565, 7
        %s1570 = smul.addr %s1567, 8
        %s1571 = sadd.s32 %s1569, %s1570
        %s1572 = smul.addr %s1571, 8
        %s1573 = scalar_lea.vmem %s6, %s1572
      $region56: #{proj_forward.3} parent=51 // pred_fallthru
        _
    $region52: #{proj_forward.3} parent=5 // pred_fallthru
      _
  $region6: #{proj_forward.3} parent=0 // loop_footer
    %s16 = sadd.s32 1, %s12
  $region7: #{proj_forward.3} parent=0 // loop_footer_branch
    %11 = sbr.rel target = $region3
  $region8: #{proj_forward.3} parent=0 // loop_exit
    _

</llo_original>
